<compile_context>
chip_gen: v5e
topology: v5e:2x2
jax: 0.10.0
libtpu: 0.0.40
codegen_flags: <defaults>
</compile_context>

<pallas_src>
import math
import jax
import jax.numpy as jnp
from jax.experimental import pallas as pl
from jax.experimental.pallas import tpu as pltpu

# Module-default widths, small sequence length (dist_weight broadcast requires
# S == max_seq_length, so max_seq_length is set to the demo sequence length).
D_SRC = 2
D_MODEL = 128
D_FF = 512
N_HEADS = 8
D_HEAD = 16             # d_q = d_k = d_v
HDH = N_HEADS * D_HEAD  # 128
MAX_SEQ = 16            # == S

NEG_INF = -1e9
LN_EPS = 1e-5


def _layernorm(x, gamma, beta):
    mu = jnp.mean(x, axis=-1, keepdims=True)
    var = jnp.mean((x - mu) ** 2, axis=-1, keepdims=True)
    return (x - mu) * jax.lax.rsqrt(var + LN_EPS) * gamma + beta


def _softmax_last(x):
    m = jnp.max(x, axis=-1, keepdims=True)
    e = jnp.exp(x - m)
    return e * pl.reciprocal(jnp.sum(e, axis=-1, keepdims=True), approx=True)


def geometric_module_kernel(
    lengths_ref,                     # scalar prefetch (SMEM), shape (B,), int32
    coords_ref,                      # [S, d_src]
    distance_ref,                    # [S, S]
    w_src_ref,                       # [d_src, D]
    dist_weight_ref,                 # [S, S]
    w_qkv_ref,                       # [D, 3*H*dh]  (concat of W_Q | W_K | W_V)
    w_o_ref,                         # [H*dh, D]
    ln1_g_ref, ln1_b_ref,            # [1, D]
    w_ff1_ref, w_ff2_ref,            # [D, F], [F, D]
    ln2_g_ref, ln2_b_ref,            # [1, D]
    pooled_ref,                      # out: [1, D]
    scores_ref,                      # out: [H, S, S]
):
    S = coords_ref.shape[0]
    b = pl.program_id(0)
    length = lengths_ref[b]

    # 1. src projection (Linear, no bias)
    x = jnp.dot(coords_ref[...], w_src_ref[...],
                preferred_element_type=jnp.float32)                  # [S, D]

    # 2. attention pad mask: True where key position >= length (computed once)
    key_idx = jax.lax.broadcasted_iota(jnp.int32, (S, S), 1)
    pad_mask = key_idx >= length                                     # [S, S]

    # 3. distance factor = softmax(distance, -1) * dist_weight
    dist_factor = _softmax_last(distance_ref[...]) * dist_weight_ref[...]

    # 4. fused multi-head distance-weighted attention
    qkv = jnp.dot(x, w_qkv_ref[...],
                  preferred_element_type=jnp.float32)                # [S, 3*H*dh]
    q = jnp.stack([qkv[:, h * D_HEAD:(h + 1) * D_HEAD]
                   for h in range(N_HEADS)], axis=0)                 # [H, S, dh]
    k = jnp.stack([qkv[:, HDH + h * D_HEAD:HDH + (h + 1) * D_HEAD]
                   for h in range(N_HEADS)], axis=0)                 # [H, S, dh]
    v = jnp.stack([qkv[:, 2 * HDH + h * D_HEAD:2 * HDH + (h + 1) * D_HEAD]
                   for h in range(N_HEADS)], axis=0)                 # [H, S, dh]

    scale = 1.0 / math.sqrt(D_HEAD)
    s = jnp.einsum('hqd,hkd->hqk', q, k,
                   preferred_element_type=jnp.float32) * scale       # [H, S, S]
    s = jnp.where(pad_mask[None, :, :], NEG_INF, s)                  # single masked select
    a = _softmax_last(s) * dist_factor[None, :, :]                   # distance weighting
    scores_ref[...] = a                                              # single full store

    ctx = jnp.einsum('hqk,hkd->hqd', a, v,
                     preferred_element_type=jnp.float32)             # [H, S, dh]
    ctx_cat = jnp.concatenate([ctx[h] for h in range(N_HEADS)], axis=-1)  # [S, H*dh]
    o = jnp.dot(ctx_cat, w_o_ref[...],
                preferred_element_type=jnp.float32)                  # [S, D]
    x1 = _layernorm(o + x, ln1_g_ref[...], ln1_b_ref[...])

    # 5. position-wise FFN (Linear -> ReLU -> Linear) + residual + LN
    f = jnp.maximum(
        jnp.dot(x1, w_ff1_ref[...], preferred_element_type=jnp.float32), 0.0)
    f = jnp.dot(f, w_ff2_ref[...], preferred_element_type=jnp.float32)
    x2 = _layernorm(f + x1, ln2_g_ref[...], ln2_b_ref[...])

    # 6. mean over valid positions [0:length]
    q_idx = jax.lax.broadcasted_iota(jnp.int32, (S, 1), 0)
    valid = (q_idx < length).astype(jnp.float32)                     # [S, 1]
    summed = jnp.sum(x2 * valid, axis=0, keepdims=True)              # [1, D]
    len_f = jnp.maximum(length, 1).astype(jnp.float32)               # guard length==0
    pooled_ref[...] = summed * (1.0 / len_f)


def init_params(key):
    ks = jax.random.split(key, 7)

    def lin(k, shape):
        bound = 1.0 / math.sqrt(shape[0])
        return jax.random.uniform(k, shape, jnp.float32, -bound, bound)

    w_q = lin(ks[1], (D_MODEL, HDH))
    w_k = lin(ks[2], (D_MODEL, HDH))
    w_v = lin(ks[3], (D_MODEL, HDH))
    return dict(
        w_src=lin(ks[0], (D_SRC, D_MODEL)),
        dist_weight=jnp.ones((MAX_SEQ, MAX_SEQ), jnp.float32),   # nn.Parameter(torch.ones)
        w_qkv=jnp.concatenate([w_q, w_k, w_v], axis=1),          # fused QKV weight
        w_o=lin(ks[4], (HDH, D_MODEL)),
        ln1_g=jnp.ones((1, D_MODEL), jnp.float32),
        ln1_b=jnp.zeros((1, D_MODEL), jnp.float32),
        w_ff1=lin(ks[5], (D_MODEL, D_FF)),
        w_ff2=lin(ks[6], (D_FF, D_MODEL)),
        ln2_g=jnp.ones((1, D_MODEL), jnp.float32),
        ln2_b=jnp.zeros((1, D_MODEL), jnp.float32),
    )


def geometric_module_forward_batched(params, coordinates, lengths, distances):
    """coordinates: [B, S, d_src], lengths: [B] int32, distances: [B, S, S]."""
    B, S, _ = coordinates.shape
    assert S == MAX_SEQ, "dist_weight broadcast requires S == max_seq_length"

    weights = (params["w_src"], params["dist_weight"], params["w_qkv"], params["w_o"],
               params["ln1_g"], params["ln1_b"], params["w_ff1"], params["w_ff2"],
               params["ln2_g"], params["ln2_b"])

    def wspec(shape):
        nd = len(shape)
        return pl.BlockSpec(shape, lambda b, L, nd=nd: (0,) * nd)   # VMEM-resident weight

    in_specs = [
        pl.BlockSpec((None, S, D_SRC), lambda b, L: (b, 0, 0)),     # coords   (per-batch)
        pl.BlockSpec((None, S, S), lambda b, L: (b, 0, 0)),         # distance (per-batch)
    ] + [wspec(w.shape) for w in weights]

    out_specs = [
        pl.BlockSpec((None, 1, D_MODEL), lambda b, L: (b, 0, 0)),
        pl.BlockSpec((None, N_HEADS, S, S), lambda b, L: (b, 0, 0, 0)),
    ]

    grid_spec = pltpu.PrefetchScalarGridSpec(
        num_scalar_prefetch=1,
        grid=(B,),
        in_specs=in_specs,
        out_specs=out_specs,
    )

    # Advisory cost estimate so XLA can overlap this small kernel with neighbors.
    flops_seq = 2 * (S * D_SRC * D_MODEL + S * D_MODEL * 3 * HDH
                     + 2 * N_HEADS * S * S * D_HEAD
                     + S * HDH * D_MODEL + 2 * S * D_MODEL * D_FF)
    transc_seq = (N_HEADS + 1) * S * S + 4 * S
    io_seq = 4 * (S * D_SRC + S * S + D_MODEL + N_HEADS * S * S)
    w_bytes = int(sum(int(w.size) for w in weights) * 4)
    cost = pl.CostEstimate(flops=int(B * flops_seq),
                           transcendentals=int(B * transc_seq),
                           bytes_accessed=int(B * io_seq + w_bytes))

    pooled, scores = pl.pallas_call(
        geometric_module_kernel,
        grid_spec=grid_spec,
        out_shape=(jax.ShapeDtypeStruct((B, 1, D_MODEL), jnp.float32),
                   jax.ShapeDtypeStruct((B, N_HEADS, S, S), jnp.float32)),
        compiler_params=pltpu.CompilerParams(dimension_semantics=("parallel",)),
        cost_estimate=cost,
    )(jnp.asarray(lengths, jnp.int32), coordinates, distances, *weights)

    return pooled, scores


def geometric_module_forward(params, coordinates, length, distance):
    """Single-sequence entry matching the PyTorch forward signature."""
    pooled, scores = geometric_module_forward_batched(
        params, coordinates[None], jnp.asarray([length], jnp.int32), distance[None])
    # PyTorch returns (outputs.squeeze(0) -> [1, d_model], scores -> [1, H, S, S])
    return pooled[0], scores


if __name__ == "__main__":
    key = jax.random.PRNGKey(0)
    kp, kc, kd = jax.random.split(key, 3)
    params = init_params(kp)

    B, S = 2, MAX_SEQ
    coordinates = jax.random.normal(kc, (B, S, D_SRC), jnp.float32)
    distances = jax.random.normal(kd, (B, S, S), jnp.float32)
    lengths = jnp.asarray([10, S], jnp.int32)          # valid (non-pad) tokens per seq

    # batched path: batch axis in the Pallas grid, weights VMEM-resident
    pooled_b, scores_b = geometric_module_forward_batched(
        params, coordinates, lengths, distances)
    jax.block_until_ready((pooled_b, scores_b))
    assert pooled_b.shape == (B, 1, D_MODEL)
    assert scores_b.shape == (B, N_HEADS, S, S)
    assert bool(jnp.all(jnp.isfinite(pooled_b))) and bool(jnp.all(jnp.isfinite(scores_b)))

    # single-sequence path (original module signature) — must agree with batched element 0
    pooled0, scores0 = geometric_module_forward(params, coordinates[0], 10, distances[0])
    jax.block_until_ready((pooled0, scores0))
    assert pooled0.shape == (1, D_MODEL)
    assert scores0.shape == (1, N_HEADS, S, S)
    assert bool(jnp.allclose(pooled0, pooled_b[0], atol=1e-5))
    assert bool(jnp.allclose(scores0[0], scores_b[0], atol=1e-5))

    print("KERNEL_OK")
</pallas_src>

<mosaic_0001>
module attributes {stable_mosaic.version = 11 : i64} {
  func.func @geometric_module_kernel(%arg0: i32, %arg1: memref<2xi32, #tpu.memory_space<smem>>, %arg2: memref<1x16x2xf32, #tpu.memory_space<vmem>>, %arg3: memref<1x16x16xf32, #tpu.memory_space<vmem>>, %arg4: memref<2x128xf32, #tpu.memory_space<vmem>>, %arg5: memref<16x16xf32, #tpu.memory_space<vmem>>, %arg6: memref<128x384xf32, #tpu.memory_space<vmem>>, %arg7: memref<128x128xf32, #tpu.memory_space<vmem>>, %arg8: memref<1x128xf32, #tpu.memory_space<vmem>>, %arg9: memref<1x128xf32, #tpu.memory_space<vmem>>, %arg10: memref<128x512xf32, #tpu.memory_space<vmem>>, %arg11: memref<512x128xf32, #tpu.memory_space<vmem>>, %arg12: memref<1x128xf32, #tpu.memory_space<vmem>>, %arg13: memref<1x128xf32, #tpu.memory_space<vmem>>, %arg14: memref<1x1x128xf32, #tpu.memory_space<vmem>>, %arg15: memref<1x8x16x16xf32, #tpu.memory_space<vmem>>) attributes {dimension_semantics = [#tpu.dimension_semantics<parallel>], iteration_bounds = array<i64: 2>, scalar_prefetch = 1 : i64, scratch_operands = 0 : i64, tpu.core_type = #tpu.core_type<tc>, window_params = [{transform_indices = @transform_0, window_bounds = array<i64: 1, 16, 2>}, {transform_indices = @transform_1, window_bounds = array<i64: 1, 16, 16>}, {pipeline_mode = #tpu.pipeline_mode<synchronous>, transform_indices = @transform_2, window_bounds = array<i64: 2, 128>}, {pipeline_mode = #tpu.pipeline_mode<synchronous>, transform_indices = @transform_3, window_bounds = array<i64: 16, 16>}, {pipeline_mode = #tpu.pipeline_mode<synchronous>, transform_indices = @transform_4, window_bounds = array<i64: 128, 384>}, {pipeline_mode = #tpu.pipeline_mode<synchronous>, transform_indices = @transform_5, window_bounds = array<i64: 128, 128>}, {pipeline_mode = #tpu.pipeline_mode<synchronous>, transform_indices = @transform_6, window_bounds = array<i64: 1, 128>}, {pipeline_mode = #tpu.pipeline_mode<synchronous>, transform_indices = @transform_7, window_bounds = array<i64: 1, 128>}, {pipeline_mode = #tpu.pipeline_mode<synchronous>, transform_indices = @transform_8, window_bounds = array<i64: 128, 512>}, {pipeline_mode = #tpu.pipeline_mode<synchronous>, transform_indices = @transform_9, window_bounds = array<i64: 512, 128>}, {pipeline_mode = #tpu.pipeline_mode<synchronous>, transform_indices = @transform_10, window_bounds = array<i64: 1, 128>}, {pipeline_mode = #tpu.pipeline_mode<synchronous>, transform_indices = @transform_11, window_bounds = array<i64: 1, 128>}, {transform_indices = @transform_12, window_bounds = array<i64: 1, 1, 128>}, {transform_indices = @transform_13, window_bounds = array<i64: 1, 8, 16, 16>}]} {
    %0 = arith.index_cast %arg0 : i32 to index
    %1 = memref.load %arg1[%0] : memref<2xi32, #tpu.memory_space<smem>>
    %c0 = arith.constant 0 : index
    %c0_0 = arith.constant 0 : index
    %c0_1 = arith.constant 0 : index
    %2 = vector.load %arg2[%c0, %c0_0, %c0_1] : memref<1x16x2xf32, #tpu.memory_space<vmem>>, vector<1x16x2xf32>
    %3 = vector.shape_cast %2 : vector<1x16x2xf32> to vector<16x2xf32>
    %c0_2 = arith.constant 0 : index
    %c0_3 = arith.constant 0 : index
    %4 = vector.load %arg4[%c0_2, %c0_3] : memref<2x128xf32, #tpu.memory_space<vmem>>, vector<2x128xf32>
    %cst = arith.constant dense<0.000000e+00> : vector<16x128xf32>
    %5 = tpu.matmul %3, %4, %cst {dimension_numbers = #tpu.dot_dimension_numbers<[1], [0], [0], [1], [0, 0, 1, 1], [], []>} : vector<16x2xf32>, vector<2x128xf32>, vector<16x128xf32> -> vector<16x128xf32>
    %6 = tpu.iota {dimensions = array<i32: 1>} : vector<16x16xi32>
    %7 = vector.broadcast %1 : i32 to vector<16x16xi32>
    %8 = arith.cmpi sge, %6, %7 : vector<16x16xi32>
    %c0_4 = arith.constant 0 : index
    %c0_5 = arith.constant 0 : index
    %c0_6 = arith.constant 0 : index
    %9 = vector.load %arg3[%c0_4, %c0_5, %c0_6] : memref<1x16x16xf32, #tpu.memory_space<vmem>>, vector<1x16x16xf32>
    %10 = vector.shape_cast %9 : vector<1x16x16xf32> to vector<16x16xf32>
    %cst_7 = arith.constant dense<0xFF800000> : vector<16xf32>
    %11 = vector.multi_reduction <maximumf>, %10, %cst_7 [1] : vector<16x16xf32> to vector<16xf32>
    %12 = vector.shape_cast %11 : vector<16xf32> to vector<16x1xf32>
    %13 = vector.broadcast %12 : vector<16x1xf32> to vector<16x16xf32>
    %14 = arith.subf %10, %13 : vector<16x16xf32>
    %15 = math.exp %14 : vector<16x16xf32>
    %cst_8 = arith.constant dense<0.000000e+00> : vector<16xf32>
    %16 = vector.multi_reduction <add>, %15, %cst_8 [1] : vector<16x16xf32> to vector<16xf32>
    %17 = vector.shape_cast %16 : vector<16xf32> to vector<16x1xf32>
    %18 = tpu.reciprocal %17 {approx = true} : vector<16x1xf32> -> vector<16x1xf32>
    %19 = vector.broadcast %18 : vector<16x1xf32> to vector<16x16xf32>
    %20 = arith.mulf %15, %19 : vector<16x16xf32>
    %c0_9 = arith.constant 0 : index
    %c0_10 = arith.constant 0 : index
    %21 = vector.load %arg5[%c0_9, %c0_10] : memref<16x16xf32, #tpu.memory_space<vmem>>, vector<16x16xf32>
    %22 = arith.mulf %20, %21 : vector<16x16xf32>
    %c0_11 = arith.constant 0 : index
    %c0_12 = arith.constant 0 : index
    %23 = vector.load %arg6[%c0_11, %c0_12] : memref<128x384xf32, #tpu.memory_space<vmem>>, vector<128x384xf32>
    %cst_13 = arith.constant dense<0.000000e+00> : vector<16x384xf32>
    %24 = tpu.matmul %5, %23, %cst_13 {dimension_numbers = #tpu.dot_dimension_numbers<[1], [0], [0], [1], [0, 0, 1, 1], [], []>} : vector<16x128xf32>, vector<128x384xf32>, vector<16x384xf32> -> vector<16x384xf32>
    %25 = vector.extract_strided_slice %24 {offsets = [0, 0], sizes = [16, 16], strides = [1, 1]} : vector<16x384xf32> to vector<16x16xf32>
    %26 = vector.extract_strided_slice %24 {offsets = [0, 16], sizes = [16, 16], strides = [1, 1]} : vector<16x384xf32> to vector<16x16xf32>
    %27 = vector.extract_strided_slice %24 {offsets = [0, 32], sizes = [16, 16], strides = [1, 1]} : vector<16x384xf32> to vector<16x16xf32>
    %28 = vector.extract_strided_slice %24 {offsets = [0, 48], sizes = [16, 16], strides = [1, 1]} : vector<16x384xf32> to vector<16x16xf32>
    %29 = vector.extract_strided_slice %24 {offsets = [0, 64], sizes = [16, 16], strides = [1, 1]} : vector<16x384xf32> to vector<16x16xf32>
    %30 = vector.extract_strided_slice %24 {offsets = [0, 80], sizes = [16, 16], strides = [1, 1]} : vector<16x384xf32> to vector<16x16xf32>
    %31 = vector.extract_strided_slice %24 {offsets = [0, 96], sizes = [16, 16], strides = [1, 1]} : vector<16x384xf32> to vector<16x16xf32>
    %32 = vector.extract_strided_slice %24 {offsets = [0, 112], sizes = [16, 16], strides = [1, 1]} : vector<16x384xf32> to vector<16x16xf32>
    %33 = vector.shape_cast %25 : vector<16x16xf32> to vector<1x16x16xf32>
    %34 = vector.shape_cast %26 : vector<16x16xf32> to vector<1x16x16xf32>
    %35 = vector.shape_cast %27 : vector<16x16xf32> to vector<1x16x16xf32>
    %36 = vector.shape_cast %28 : vector<16x16xf32> to vector<1x16x16xf32>
    %37 = vector.shape_cast %29 : vector<16x16xf32> to vector<1x16x16xf32>
    %38 = vector.shape_cast %30 : vector<16x16xf32> to vector<1x16x16xf32>
    %39 = vector.shape_cast %31 : vector<16x16xf32> to vector<1x16x16xf32>
    %40 = vector.shape_cast %32 : vector<16x16xf32> to vector<1x16x16xf32>
    %41 = tpu.concatenate %33, %34, %35, %36, %37, %38, %39, %40 in 0 : vector<1x16x16xf32>, vector<1x16x16xf32>, vector<1x16x16xf32>, vector<1x16x16xf32>, vector<1x16x16xf32>, vector<1x16x16xf32>, vector<1x16x16xf32>, vector<1x16x16xf32> -> vector<8x16x16xf32>
    %42 = vector.extract_strided_slice %24 {offsets = [0, 128], sizes = [16, 16], strides = [1, 1]} : vector<16x384xf32> to vector<16x16xf32>
    %43 = vector.extract_strided_slice %24 {offsets = [0, 144], sizes = [16, 16], strides = [1, 1]} : vector<16x384xf32> to vector<16x16xf32>
    %44 = vector.extract_strided_slice %24 {offsets = [0, 160], sizes = [16, 16], strides = [1, 1]} : vector<16x384xf32> to vector<16x16xf32>
    %45 = vector.extract_strided_slice %24 {offsets = [0, 176], sizes = [16, 16], strides = [1, 1]} : vector<16x384xf32> to vector<16x16xf32>
    %46 = vector.extract_strided_slice %24 {offsets = [0, 192], sizes = [16, 16], strides = [1, 1]} : vector<16x384xf32> to vector<16x16xf32>
    %47 = vector.extract_strided_slice %24 {offsets = [0, 208], sizes = [16, 16], strides = [1, 1]} : vector<16x384xf32> to vector<16x16xf32>
    %48 = vector.extract_strided_slice %24 {offsets = [0, 224], sizes = [16, 16], strides = [1, 1]} : vector<16x384xf32> to vector<16x16xf32>
    %49 = vector.extract_strided_slice %24 {offsets = [0, 240], sizes = [16, 16], strides = [1, 1]} : vector<16x384xf32> to vector<16x16xf32>
    %50 = vector.shape_cast %42 : vector<16x16xf32> to vector<1x16x16xf32>
    %51 = vector.shape_cast %43 : vector<16x16xf32> to vector<1x16x16xf32>
    %52 = vector.shape_cast %44 : vector<16x16xf32> to vector<1x16x16xf32>
    %53 = vector.shape_cast %45 : vector<16x16xf32> to vector<1x16x16xf32>
    %54 = vector.shape_cast %46 : vector<16x16xf32> to vector<1x16x16xf32>
    %55 = vector.shape_cast %47 : vector<16x16xf32> to vector<1x16x16xf32>
    %56 = vector.shape_cast %48 : vector<16x16xf32> to vector<1x16x16xf32>
    %57 = vector.shape_cast %49 : vector<16x16xf32> to vector<1x16x16xf32>
    %58 = tpu.concatenate %50, %51, %52, %53, %54, %55, %56, %57 in 0 : vector<1x16x16xf32>, vector<1x16x16xf32>, vector<1x16x16xf32>, vector<1x16x16xf32>, vector<1x16x16xf32>, vector<1x16x16xf32>, vector<1x16x16xf32>, vector<1x16x16xf32> -> vector<8x16x16xf32>
    %59 = vector.extract_strided_slice %24 {offsets = [0, 256], sizes = [16, 16], strides = [1, 1]} : vector<16x384xf32> to vector<16x16xf32>
    %60 = vector.extract_strided_slice %24 {offsets = [0, 272], sizes = [16, 16], strides = [1, 1]} : vector<16x384xf32> to vector<16x16xf32>
    %61 = vector.extract_strided_slice %24 {offsets = [0, 288], sizes = [16, 16], strides = [1, 1]} : vector<16x384xf32> to vector<16x16xf32>
    %62 = vector.extract_strided_slice %24 {offsets = [0, 304], sizes = [16, 16], strides = [1, 1]} : vector<16x384xf32> to vector<16x16xf32>
    %63 = vector.extract_strided_slice %24 {offsets = [0, 320], sizes = [16, 16], strides = [1, 1]} : vector<16x384xf32> to vector<16x16xf32>
    %64 = vector.extract_strided_slice %24 {offsets = [0, 336], sizes = [16, 16], strides = [1, 1]} : vector<16x384xf32> to vector<16x16xf32>
    %65 = vector.extract_strided_slice %24 {offsets = [0, 352], sizes = [16, 16], strides = [1, 1]} : vector<16x384xf32> to vector<16x16xf32>
    %66 = vector.extract_strided_slice %24 {offsets = [0, 368], sizes = [16, 16], strides = [1, 1]} : vector<16x384xf32> to vector<16x16xf32>
    %67 = vector.shape_cast %59 : vector<16x16xf32> to vector<1x16x16xf32>
    %68 = vector.shape_cast %60 : vector<16x16xf32> to vector<1x16x16xf32>
    %69 = vector.shape_cast %61 : vector<16x16xf32> to vector<1x16x16xf32>
    %70 = vector.shape_cast %62 : vector<16x16xf32> to vector<1x16x16xf32>
    %71 = vector.shape_cast %63 : vector<16x16xf32> to vector<1x16x16xf32>
    %72 = vector.shape_cast %64 : vector<16x16xf32> to vector<1x16x16xf32>
    %73 = vector.shape_cast %65 : vector<16x16xf32> to vector<1x16x16xf32>
    %74 = vector.shape_cast %66 : vector<16x16xf32> to vector<1x16x16xf32>
    %75 = tpu.concatenate %67, %68, %69, %70, %71, %72, %73, %74 in 0 : vector<1x16x16xf32>, vector<1x16x16xf32>, vector<1x16x16xf32>, vector<1x16x16xf32>, vector<1x16x16xf32>, vector<1x16x16xf32>, vector<1x16x16xf32>, vector<1x16x16xf32> -> vector<8x16x16xf32>
    "tpu.trace_start"() <{level = 10 : i32, message = "hqd,hkd->hqk"}> : () -> ()
    %cst_14 = arith.constant dense<0.000000e+00> : vector<8x16x16xf32>
    %76 = tpu.matmul %41, %58, %cst_14 {dimension_numbers = #tpu.dot_dimension_numbers<[2], [2], [1], [1], [0, 0, 0, 1, 1, 1], [0], [0]>} : vector<8x16x16xf32>, vector<8x16x16xf32>, vector<8x16x16xf32> -> vector<8x16x16xf32>
    "tpu.trace_stop"() : () -> ()
    %cst_15 = arith.constant 2.500000e-01 : f32
    %77 = vector.broadcast %cst_15 : f32 to vector<8x16x16xf32>
    %78 = arith.mulf %76, %77 : vector<8x16x16xf32>
    %79 = vector.shape_cast %8 : vector<16x16xi1> to vector<1x16x16xi1>
    %cst_16 = arith.constant -1.000000e+09 : f32
    %80 = vector.shape_cast %79 : vector<1x16x16xi1> to vector<1x16x16xi1>
    %81 = vector.broadcast %80 : vector<1x16x16xi1> to vector<8x16x16xi1>
    %82 = vector.broadcast %cst_16 : f32 to vector<8x16x16xf32>
    %83 = arith.select %81, %82, %78 : vector<8x16x16xi1>, vector<8x16x16xf32>
    %cst_17 = arith.constant dense<0xFF800000> : vector<8x16xf32>
    %84 = vector.multi_reduction <maximumf>, %83, %cst_17 [2] : vector<8x16x16xf32> to vector<8x16xf32>
    %85 = vector.shape_cast %84 : vector<8x16xf32> to vector<8x16x1xf32>
    %86 = vector.broadcast %85 : vector<8x16x1xf32> to vector<8x16x16xf32>
    %87 = arith.subf %83, %86 : vector<8x16x16xf32>
    %88 = math.exp %87 : vector<8x16x16xf32>
    %cst_18 = arith.constant dense<0.000000e+00> : vector<8x16xf32>
    %89 = vector.multi_reduction <add>, %88, %cst_18 [2] : vector<8x16x16xf32> to vector<8x16xf32>
    %90 = vector.shape_cast %89 : vector<8x16xf32> to vector<8x16x1xf32>
    %91 = tpu.reciprocal %90 {approx = true} : vector<8x16x1xf32> -> vector<8x16x1xf32>
    %92 = vector.broadcast %91 : vector<8x16x1xf32> to vector<8x16x16xf32>
    %93 = arith.mulf %88, %92 : vector<8x16x16xf32>
    %94 = vector.shape_cast %22 : vector<16x16xf32> to vector<1x16x16xf32>
    %95 = vector.broadcast %94 : vector<1x16x16xf32> to vector<8x16x16xf32>
    %96 = arith.mulf %93, %95 : vector<8x16x16xf32>
    %c0_19 = arith.constant 0 : index
    %c0_20 = arith.constant 0 : index
    %c0_21 = arith.constant 0 : index
    %c0_22 = arith.constant 0 : index
    %97 = vector.load %arg15[%c0_19, %c0_20, %c0_21, %c0_22] : memref<1x8x16x16xf32, #tpu.memory_space<vmem>>, vector<1x8x16x16xf32>
    %98 = vector.shape_cast %97 : vector<1x8x16x16xf32> to vector<8x16x16xf32>
    %99 = vector.shape_cast %96 : vector<8x16x16xf32> to vector<1x8x16x16xf32>
    tpu.vector_store %arg15[%c0_19, %c0_20, %c0_21, %c0_22], %99 {strides = array<i32>} : memref<1x8x16x16xf32, #tpu.memory_space<vmem>>, vector<1x8x16x16xf32>,
    "tpu.trace_start"() <{level = 10 : i32, message = "hqk,hkd->hqd"}> : () -> ()
    %cst_23 = arith.constant dense<0.000000e+00> : vector<8x16x16xf32>
    %100 = tpu.matmul %96, %75, %cst_23 {dimension_numbers = #tpu.dot_dimension_numbers<[2], [1], [1], [2], [0, 0, 0, 1, 1, 2], [0], [0]>} : vector<8x16x16xf32>, vector<8x16x16xf32>, vector<8x16x16xf32> -> vector<8x16x16xf32>
    "tpu.trace_stop"() : () -> ()
    %101 = vector.extract_strided_slice %100 {offsets = [0, 0, 0], sizes = [1, 16, 16], strides = [1, 1, 1]} : vector<8x16x16xf32> to vector<1x16x16xf32>
    %102 = vector.shape_cast %101 : vector<1x16x16xf32> to vector<16x16xf32>
    %103 = vector.extract_strided_slice %100 {offsets = [1, 0, 0], sizes = [1, 16, 16], strides = [1, 1, 1]} : vector<8x16x16xf32> to vector<1x16x16xf32>
    %104 = vector.shape_cast %103 : vector<1x16x16xf32> to vector<16x16xf32>
    %105 = vector.extract_strided_slice %100 {offsets = [2, 0, 0], sizes = [1, 16, 16], strides = [1, 1, 1]} : vector<8x16x16xf32> to vector<1x16x16xf32>
    %106 = vector.shape_cast %105 : vector<1x16x16xf32> to vector<16x16xf32>
    %107 = vector.extract_strided_slice %100 {offsets = [3, 0, 0], sizes = [1, 16, 16], strides = [1, 1, 1]} : vector<8x16x16xf32> to vector<1x16x16xf32>
    %108 = vector.shape_cast %107 : vector<1x16x16xf32> to vector<16x16xf32>
    %109 = vector.extract_strided_slice %100 {offsets = [4, 0, 0], sizes = [1, 16, 16], strides = [1, 1, 1]} : vector<8x16x16xf32> to vector<1x16x16xf32>
    %110 = vector.shape_cast %109 : vector<1x16x16xf32> to vector<16x16xf32>
    %111 = vector.extract_strided_slice %100 {offsets = [5, 0, 0], sizes = [1, 16, 16], strides = [1, 1, 1]} : vector<8x16x16xf32> to vector<1x16x16xf32>
    %112 = vector.shape_cast %111 : vector<1x16x16xf32> to vector<16x16xf32>
    %113 = vector.extract_strided_slice %100 {offsets = [6, 0, 0], sizes = [1, 16, 16], strides = [1, 1, 1]} : vector<8x16x16xf32> to vector<1x16x16xf32>
    %114 = vector.shape_cast %113 : vector<1x16x16xf32> to vector<16x16xf32>
    %115 = vector.extract_strided_slice %100 {offsets = [7, 0, 0], sizes = [1, 16, 16], strides = [1, 1, 1]} : vector<8x16x16xf32> to vector<1x16x16xf32>
    %116 = vector.shape_cast %115 : vector<1x16x16xf32> to vector<16x16xf32>
    %117 = tpu.concatenate %102, %104, %106, %108, %110, %112, %114, %116 in 1 : vector<16x16xf32>, vector<16x16xf32>, vector<16x16xf32>, vector<16x16xf32>, vector<16x16xf32>, vector<16x16xf32>, vector<16x16xf32>, vector<16x16xf32> -> vector<16x128xf32>
    %c0_24 = arith.constant 0 : index
    %c0_25 = arith.constant 0 : index
    %118 = vector.load %arg7[%c0_24, %c0_25] : memref<128x128xf32, #tpu.memory_space<vmem>>, vector<128x128xf32>
    %cst_26 = arith.constant dense<0.000000e+00> : vector<16x128xf32>
    %119 = tpu.matmul %117, %118, %cst_26 {dimension_numbers = #tpu.dot_dimension_numbers<[1], [0], [0], [1], [0, 0, 1, 1], [], []>} : vector<16x128xf32>, vector<128x128xf32>, vector<16x128xf32> -> vector<16x128xf32>
    %120 = arith.addf %119, %5 : vector<16x128xf32>
    %c0_27 = arith.constant 0 : index
    %c0_28 = arith.constant 0 : index
    %121 = vector.load %arg8[%c0_27, %c0_28] : memref<1x128xf32, #tpu.memory_space<vmem>>, vector<1x128xf32>
    %c0_29 = arith.constant 0 : index
    %c0_30 = arith.constant 0 : index
    %122 = vector.load %arg9[%c0_29, %c0_30] : memref<1x128xf32, #tpu.memory_space<vmem>>, vector<1x128xf32>
    %cst_31 = arith.constant dense<0.000000e+00> : vector<16xf32>
    %123 = vector.multi_reduction <add>, %120, %cst_31 [1] : vector<16x128xf32> to vector<16xf32>
    %124 = vector.shape_cast %123 : vector<16xf32> to vector<16x1xf32>
    %cst_32 = arith.constant 1.280000e+02 : f32
    %125 = vector.broadcast %cst_32 : f32 to vector<16x1xf32>
    %126 = arith.divf %124, %125 : vector<16x1xf32>
    %127 = vector.broadcast %126 : vector<16x1xf32> to vector<16x128xf32>
    %128 = arith.subf %120, %127 : vector<16x128xf32>
    %129 = arith.mulf %128, %128 : vector<16x128xf32>
    %cst_33 = arith.constant dense<0.000000e+00> : vector<16xf32>
    %130 = vector.multi_reduction <add>, %129, %cst_33 [1] : vector<16x128xf32> to vector<16xf32>
    %131 = vector.shape_cast %130 : vector<16xf32> to vector<16x1xf32>
    %cst_34 = arith.constant 1.280000e+02 : f32
    %132 = vector.broadcast %cst_34 : f32 to vector<16x1xf32>
    %133 = arith.divf %131, %132 : vector<16x1xf32>
    %134 = vector.broadcast %126 : vector<16x1xf32> to vector<16x128xf32>
    %135 = arith.subf %120, %134 : vector<16x128xf32>
    %cst_35 = arith.constant 9.99999974E-6 : f32
    %136 = vector.broadcast %cst_35 : f32 to vector<16x1xf32>
    %137 = arith.addf %133, %136 : vector<16x1xf32>
    %138 = math.rsqrt %137 : vector<16x1xf32>
    %139 = vector.broadcast %138 : vector<16x1xf32> to vector<16x128xf32>
    %140 = arith.mulf %135, %139 : vector<16x128xf32>
    %141 = vector.broadcast %121 : vector<1x128xf32> to vector<16x128xf32>
    %142 = arith.mulf %140, %141 : vector<16x128xf32>
    %143 = vector.broadcast %122 : vector<1x128xf32> to vector<16x128xf32>
    %144 = arith.addf %142, %143 : vector<16x128xf32>
    %c0_36 = arith.constant 0 : index
    %c0_37 = arith.constant 0 : index
    %145 = vector.load %arg10[%c0_36, %c0_37] : memref<128x512xf32, #tpu.memory_space<vmem>>, vector<128x512xf32>
    %cst_38 = arith.constant dense<0.000000e+00> : vector<16x512xf32>
    %146 = tpu.matmul %144, %145, %cst_38 {dimension_numbers = #tpu.dot_dimension_numbers<[1], [0], [0], [1], [0, 0, 1, 1], [], []>} : vector<16x128xf32>, vector<128x512xf32>, vector<16x512xf32> -> vector<16x512xf32>
    %cst_39 = arith.constant 0.000000e+00 : f32
    %147 = vector.broadcast %cst_39 : f32 to vector<16x512xf32>
    %148 = arith.maximumf %146, %147 : vector<16x512xf32>
    %c0_40 = arith.constant 0 : index
    %c0_41 = arith.constant 0 : index
    %149 = vector.load %arg11[%c0_40, %c0_41] : memref<512x128xf32, #tpu.memory_space<vmem>>, vector<512x128xf32>
    %cst_42 = arith.constant dense<0.000000e+00> : vector<16x128xf32>
    %150 = tpu.matmul %148, %149, %cst_42 {dimension_numbers = #tpu.dot_dimension_numbers<[1], [0], [0], [1], [0, 0, 1, 1], [], []>} : vector<16x512xf32>, vector<512x128xf32>, vector<16x128xf32> -> vector<16x128xf32>
    %151 = arith.addf %150, %144 : vector<16x128xf32>
    %c0_43 = arith.constant 0 : index
    %c0_44 = arith.constant 0 : index
    %152 = vector.load %arg12[%c0_43, %c0_44] : memref<1x128xf32, #tpu.memory_space<vmem>>, vector<1x128xf32>
    %c0_45 = arith.constant 0 : index
    %c0_46 = arith.constant 0 : index
    %153 = vector.load %arg13[%c0_45, %c0_46] : memref<1x128xf32, #tpu.memory_space<vmem>>, vector<1x128xf32>
    %cst_47 = arith.constant dense<0.000000e+00> : vector<16xf32>
    %154 = vector.multi_reduction <add>, %151, %cst_47 [1] : vector<16x128xf32> to vector<16xf32>
    %155 = vector.shape_cast %154 : vector<16xf32> to vector<16x1xf32>
    %cst_48 = arith.constant 1.280000e+02 : f32
    %156 = vector.broadcast %cst_48 : f32 to vector<16x1xf32>
    %157 = arith.divf %155, %156 : vector<16x1xf32>
    %158 = vector.broadcast %157 : vector<16x1xf32> to vector<16x128xf32>
    %159 = arith.subf %151, %158 : vector<16x128xf32>
    %160 = arith.mulf %159, %159 : vector<16x128xf32>
    %cst_49 = arith.constant dense<0.000000e+00> : vector<16xf32>
    %161 = vector.multi_reduction <add>, %160, %cst_49 [1] : vector<16x128xf32> to vector<16xf32>
    %162 = vector.shape_cast %161 : vector<16xf32> to vector<16x1xf32>
    %cst_50 = arith.constant 1.280000e+02 : f32
    %163 = vector.broadcast %cst_50 : f32 to vector<16x1xf32>
    %164 = arith.divf %162, %163 : vector<16x1xf32>
    %165 = vector.broadcast %157 : vector<16x1xf32> to vector<16x128xf32>
    %166 = arith.subf %151, %165 : vector<16x128xf32>
    %cst_51 = arith.constant 9.99999974E-6 : f32
    %167 = vector.broadcast %cst_51 : f32 to vector<16x1xf32>
    %168 = arith.addf %164, %167 : vector<16x1xf32>
    %169 = math.rsqrt %168 : vector<16x1xf32>
    %170 = vector.broadcast %169 : vector<16x1xf32> to vector<16x128xf32>
    %171 = arith.mulf %166, %170 : vector<16x128xf32>
    %172 = vector.broadcast %152 : vector<1x128xf32> to vector<16x128xf32>
    %173 = arith.mulf %171, %172 : vector<16x128xf32>
    %174 = vector.broadcast %153 : vector<1x128xf32> to vector<16x128xf32>
    %175 = arith.addf %173, %174 : vector<16x128xf32>
    %176 = tpu.iota {dimensions = array<i32: 0>} : vector<16x1xi32>
    %177 = vector.broadcast %1 : i32 to vector<16x1xi32>
    %178 = arith.cmpi slt, %176, %177 : vector<16x1xi32>
    %179 = arith.extui %178 : vector<16x1xi1> to vector<16x1xi32>
    %180 = arith.sitofp %179 : vector<16x1xi32> to vector<16x1xf32>
    %181 = vector.broadcast %180 : vector<16x1xf32> to vector<16x128xf32>
    %182 = arith.mulf %175, %181 : vector<16x128xf32>
    %cst_52 = arith.constant dense<0.000000e+00> : vector<128xf32>
    %183 = vector.multi_reduction <add>, %182, %cst_52 [0] : vector<16x128xf32> to vector<128xf32>
    %184 = vector.shape_cast %183 : vector<128xf32> to vector<1x128xf32>
    %c1_i32 = arith.constant 1 : i32
    %185 = arith.maxsi %1, %c1_i32 : i32
    %186 = arith.sitofp %185 : i32 to f32
    %cst_53 = arith.constant 1.000000e+00 : f32
    %187 = arith.divf %cst_53, %186 : f32
    %188 = vector.broadcast %187 : f32 to vector<1x128xf32>
    %189 = arith.mulf %184, %188 : vector<1x128xf32>
    %c0_54 = arith.constant 0 : index
    %c0_55 = arith.constant 0 : index
    %c0_56 = arith.constant 0 : index
    %190 = vector.load %arg14[%c0_54, %c0_55, %c0_56] : memref<1x1x128xf32, #tpu.memory_space<vmem>>, vector<1x1x128xf32>
    %191 = vector.shape_cast %190 : vector<1x1x128xf32> to vector<1x128xf32>
    %192 = vector.shape_cast %189 : vector<1x128xf32> to vector<1x1x128xf32>
    tpu.vector_store %arg14[%c0_54, %c0_55, %c0_56], %192 {strides = array<i32>} : memref<1x1x128xf32, #tpu.memory_space<vmem>>, vector<1x1x128xf32>,
    return
  }
  func.func @transform_0(%arg0: i32, %arg1: memref<2xi32, #tpu.memory_space<smem>>) -> (i32, i32, i32) {
    %c0_i32 = arith.constant 0 : i32
    %c0_i32_0 = arith.constant 0 : i32
    %c0_i32_1 = arith.constant 0 : i32
    return %arg0, %c0_i32, %c0_i32_0 : i32, i32, i32
  }
  func.func @transform_1(%arg0: i32, %arg1: memref<2xi32, #tpu.memory_space<smem>>) -> (i32, i32, i32) {
    %c0_i32 = arith.constant 0 : i32
    %c0_i32_0 = arith.constant 0 : i32
    %c0_i32_1 = arith.constant 0 : i32
    return %arg0, %c0_i32, %c0_i32_0 : i32, i32, i32
  }
  func.func @transform_2(%arg0: i32, %arg1: memref<2xi32, #tpu.memory_space<smem>>) -> (i32, i32) {
    %c0_i32 = arith.constant 0 : i32
    %c0_i32_0 = arith.constant 0 : i32
    %c0_i32_1 = arith.constant 0 : i32
    return %c0_i32, %c0_i32_0 : i32, i32
  }
  func.func @transform_3(%arg0: i32, %arg1: memref<2xi32, #tpu.memory_space<smem>>) -> (i32, i32) {
    %c0_i32 = arith.constant 0 : i32
    %c0_i32_0 = arith.constant 0 : i32
    %c0_i32_1 = arith.constant 0 : i32
    return %c0_i32, %c0_i32_0 : i32, i32
  }
  func.func @transform_4(%arg0: i32, %arg1: memref<2xi32, #tpu.memory_space<smem>>) -> (i32, i32) {
    %c0_i32 = arith.constant 0 : i32
    %c0_i32_0 = arith.constant 0 : i32
    %c0_i32_1 = arith.constant 0 : i32
    return %c0_i32, %c0_i32_0 : i32, i32
  }
  func.func @transform_5(%arg0: i32, %arg1: memref<2xi32, #tpu.memory_space<smem>>) -> (i32, i32) {
    %c0_i32 = arith.constant 0 : i32
    %c0_i32_0 = arith.constant 0 : i32
    %c0_i32_1 = arith.constant 0 : i32
    return %c0_i32, %c0_i32_0 : i32, i32
  }
  func.func @transform_6(%arg0: i32, %arg1: memref<2xi32, #tpu.memory_space<smem>>) -> (i32, i32) {
    %c0_i32 = arith.constant 0 : i32
    %c0_i32_0 = arith.constant 0 : i32
    %c0_i32_1 = arith.constant 0 : i32
    return %c0_i32, %c0_i32_0 : i32, i32
  }
  func.func @transform_7(%arg0: i32, %arg1: memref<2xi32, #tpu.memory_space<smem>>) -> (i32, i32) {
    %c0_i32 = arith.constant 0 : i32
    %c0_i32_0 = arith.constant 0 : i32
    %c0_i32_1 = arith.constant 0 : i32
    return %c0_i32, %c0_i32_0 : i32, i32
  }
  func.func @transform_8(%arg0: i32, %arg1: memref<2xi32, #tpu.memory_space<smem>>) -> (i32, i32) {
    %c0_i32 = arith.constant 0 : i32
    %c0_i32_0 = arith.constant 0 : i32
    %c0_i32_1 = arith.constant 0 : i32
    return %c0_i32, %c0_i32_0 : i32, i32
  }
  func.func @transform_9(%arg0: i32, %arg1: memref<2xi32, #tpu.memory_space<smem>>) -> (i32, i32) {
    %c0_i32 = arith.constant 0 : i32
    %c0_i32_0 = arith.constant 0 : i32
    %c0_i32_1 = arith.constant 0 : i32
    return %c0_i32, %c0_i32_0 : i32, i32
  }
  func.func @transform_10(%arg0: i32, %arg1: memref<2xi32, #tpu.memory_space<smem>>) -> (i32, i32) {
    %c0_i32 = arith.constant 0 : i32
    %c0_i32_0 = arith.constant 0 : i32
    %c0_i32_1 = arith.constant 0 : i32
    return %c0_i32, %c0_i32_0 : i32, i32
  }
  func.func @transform_11(%arg0: i32, %arg1: memref<2xi32, #tpu.memory_space<smem>>) -> (i32, i32) {
    %c0_i32 = arith.constant 0 : i32
    %c0_i32_0 = arith.constant 0 : i32
    %c0_i32_1 = arith.constant 0 : i32
    return %c0_i32, %c0_i32_0 : i32, i32
  }
  func.func @transform_12(%arg0: i32, %arg1: memref<2xi32, #tpu.memory_space<smem>>) -> (i32, i32, i32) {
    %c0_i32 = arith.constant 0 : i32
    %c0_i32_0 = arith.constant 0 : i32
    %c0_i32_1 = arith.constant 0 : i32
    return %arg0, %c0_i32, %c0_i32_0 : i32, i32, i32
  }
  func.func @transform_13(%arg0: i32, %arg1: memref<2xi32, #tpu.memory_space<smem>>) -> (i32, i32, i32, i32) {
    %c0_i32 = arith.constant 0 : i32
    %c0_i32_0 = arith.constant 0 : i32
    %c0_i32_1 = arith.constant 0 : i32
    %c0_i32_2 = arith.constant 0 : i32
    return %arg0, %c0_i32, %c0_i32_0, %c0_i32_1 : i32, i32, i32, i32
  }
}

</mosaic_0001>

<llo_original>
// kernel: tpu_custom_call.1
$region0: #{tpu_custom_call.1}
  #allocation0 [shape = 'u32[]', space=smem, size = 0x4, offset = 0x4, fixed_abs, tag = 'smem constant byte address 0x4 - core index']
  #allocation1 [shape = 'u32[72,128]{1,0:T(1,128)}', space=vmem, size = 0x9000, scoped, tag = 'internal scratch']
  #allocation2 [shape = 's32[1]{0}', space=sflag, size = 0x4, scoped, tag = 'scoped memory for tpu_custom_call.1']
  #allocation3 [shape = 'u8[512]{0}', space=smem, size = 0x200, scoped, tag = 'prefetched SMEM operand 0']
  %s0 = inlined_call_operand.vmem [shape: s32[2], index: 0, kind: input, shape index: {}]
  %s1 = inlined_call_operand.vmem [shape: f32[2,16,2], index: 1, kind: input, shape index: {}]
  %s2 = inlined_call_operand.vmem [shape: f32[2,16,16], index: 2, kind: input, shape index: {}]
  %s3 = inlined_call_operand.vmem [shape: f32[2,128], index: 3, kind: input, shape index: {}]
  %s4 = inlined_call_operand.hbm [shape: f32[16,16], index: 4, kind: input, shape index: {}]
  %s5 = inlined_call_operand.hbm [shape: f32[128,384], index: 5, kind: input, shape index: {}]
  %s6 = inlined_call_operand.hbm [shape: f32[128,128], index: 6, kind: input, shape index: {}]
  %s7 = inlined_call_operand.vmem [shape: f32[1,128], index: 7, kind: input, shape index: {}]
  %s8 = inlined_call_operand.vmem [shape: f32[1,128], index: 8, kind: input, shape index: {}]
  %s9 = inlined_call_operand.hbm [shape: f32[128,512], index: 9, kind: input, shape index: {}]
  %s10 = inlined_call_operand.hbm [shape: f32[512,128], index: 10, kind: input, shape index: {}]
  %s11 = inlined_call_operand.vmem [shape: f32[1,128], index: 11, kind: input, shape index: {}]
  %s12 = inlined_call_operand.vmem [shape: f32[1,128], index: 12, kind: input, shape index: {}]
  %s13 = inlined_call_operand.hbm [shape: f32[2,1,128], index: 13, kind: output, shape index: {0}]
  %s14 = inlined_call_operand.hbm [shape: f32[2,8,16,16], index: 14, kind: output, shape index: {1}]
  %15 = xla_tuple %s13, %s14
  %s16 = sld [smem:[#allocation0]]
  $region109: #{tpu_custom_call.1} parent=0
    _
  %s18 = ssub.s32 1, %s16
  %s19 = scalar_select 0, %s18, %s16
  %s21 = sshll.u32 %s0, 4
  %s22 = int_to_ptr.vmem [resolvable:$true] %s21
  %24 = dma.vmem_to_smem %s22, 16, [#allocation3], [#allocation2]
  %26 = dma.done [#allocation2], 16
  %27 = sfence
  $region1: #{tpu_custom_call.1} parent=0
    #allocation4 [shape = 'u8[8192]{0}', space=vmem, size = 0x2000, scoped, tag = 'input window, operand 4, single buffered']
    #allocation5 [shape = 's32[2]{0}', space=sflag, size = 0x8, scoped, tag = 'scoped memory for tpu_custom_call.1']
    #allocation6 [shape = 's32[2]{0}', space=sflag, size = 0x8, scoped, tag = 'scoped memory for tpu_custom_call.1']
    #allocation7 [shape = 'u8[196608]{0}', space=vmem, size = 0x30000, scoped, tag = 'input window, operand 5, single buffered']
    #allocation8 [shape = 's32[1]{0}', space=sflag, size = 0x4, scoped, tag = 'scoped memory for tpu_custom_call.1']
    #allocation9 [shape = 'u8[65536]{0}', space=vmem, size = 0x10000, scoped, tag = 'input window, operand 6, single buffered']
    #allocation10 [shape = 'u8[262144]{0}', space=vmem, size = 0x40000, scoped, tag = 'input window, operand 9, single buffered']
    #allocation11 [shape = 's32[1]{0}', space=sflag, size = 0x4, scoped, tag = 'scoped memory for tpu_custom_call.1']
    #allocation12 [shape = 'u8[262144]{0}', space=vmem, size = 0x40000, scoped, tag = 'input window, operand 10, single buffered']
    #allocation13 [shape = 'u8[1024]{0}', space=vmem, size = 0x400, scoped, tag = 'output window, operand 0']
    #allocation14 [shape = 'u8[131072]{0}', space=vmem, size = 0x20000, scoped, tag = 'output window, operand 1']
    #allocation15 [shape = 's32[2]{0}', space=sflag, size = 0x8, scoped, tag = 'scoped memory for tpu_custom_call.1']
    %28 = vsyncpa [#allocation5], 0
    %29 = vsyncpa [#allocation8], 0
    %30 = vsyncpa [#allocation11], 0
    %31 = vsyncpa [#allocation6], 0
    %s32 = scalar_lea.sflag [#allocation6], 1
    %33 = vsyncpa %s32, 0
    %34 = vsyncpa [#allocation15], 0
    %s35 = scalar_lea.sflag [#allocation15], 1
    %36 = vsyncpa %s35, 0
    loop: start=0, step=1, limit=4
    $region2: #{tpu_custom_call.1} parent=1 // loop_pre_header
      _
    $region3: #{tpu_custom_call.1} parent=1 // loop_header
      %s38 = sphi 0, %s42
      %p39 = scmp.ge.s32.totalorder %s38, 4
      %s48 = sphi 0, %s50
      %s51 = sphi 0, %s48
      %s52 = sphi 0, %s51
      %s68 = sphi 0, %s52
      %s74 = sphi 0, %s76
      %s77 = sphi 0, %s74
      %s78 = sphi 0, %s77
      %s94 = sphi 0, %s78
      %s98 = sphi 0, %s98
      %s100 = sphi 0, %s98
      %s101 = sphi 0, %s100
      %s115 = sphi 0, %s101
      %s119 = sphi 0, %s119
      %s121 = sphi 0, %s119
      %s122 = sphi 0, %s121
      %s136 = sphi 0, %s122
      %s140 = sphi 0, %s140
      %s142 = sphi 0, %s140
      %s143 = sphi 0, %s142
      %s157 = sphi 0, %s143
      %s161 = sphi 0, %s161
      %s163 = sphi 0, %s161
      %s164 = sphi 0, %s163
      %s178 = sphi 0, %s164
      %s182 = sphi 0, %s182
      %s184 = sphi 0, %s182
      %s185 = sphi 0, %s184
      %s199 = sphi 0, %s185
      %s203 = sphi 0, %s203
      %s205 = sphi 0, %s203
      %s206 = sphi 0, %s205
      %s220 = sphi 0, %s206
      %s224 = sphi 0, %s224
      %s226 = sphi 0, %s224
      %s227 = sphi 0, %s226
      %s241 = sphi 0, %s227
      %s245 = sphi 0, %s245
      %s247 = sphi 0, %s245
      %s248 = sphi 0, %s247
      %s262 = sphi 0, %s248
      %s266 = sphi 0, %s266
      %s268 = sphi 0, %s266
      %s269 = sphi 0, %s268
      %s283 = sphi 0, %s269
      %s287 = sphi 0, %s287
      %s289 = sphi 0, %s287
      %s290 = sphi 0, %s289
      %s304 = sphi 0, %s290
      %s310 = sphi 0, %s312
      %s313 = sphi 0, %s310
      %s314 = sphi 0, %s313
      %s330 = sphi 0, %s314
      %s336 = sphi 0, %s338
      %s339 = sphi 0, %s336
      %s340 = sphi 0, %s339
      %s356 = sphi 0, %s340
    $region4: #{tpu_custom_call.1} parent=1 // loop_header_branch
      %41 = sbr.rel (%p39) target = $region8
    $region5: #{tpu_custom_call.1} parent=1 // loop_body
      %s43 = ssub.s32 %s38, 1
      %s44 = ssub.s32 %s38, 2
      %s45 = sadd.s32 %s38, 1
      %s46 = ssub.s32 %s38, %s45
      %p47 = scmp.eq.s32.totalorder %s46, 0
      %s49 = sadd.s32 %s48, 1
      %s50 = scalar_select %p47, %s48, %s49
      %p53 = pneg %p47
      %p54 = scmp.eq.s32.totalorder %s38, 1
      %p55 = por %p53, %p54
      %p56 = scmp.ne.s32.totalorder %s48, %s51
      %p57 = scmp.eq.s32.totalorder %s38, 0
      %p58 = por %p56, %p57
      %p59 = scmp.ne.s32.totalorder %s48, %s51
      %p60 = scmp.eq.s32.totalorder %s43, 1
      %p61 = por %p59, %p60
      %p62 = scmp.ne.s32.totalorder %s51, %s52
      %p63 = scmp.eq.s32.totalorder %s43, 0
      %p64 = por %p62, %p63
      %p65 = scmp.ne.s32.totalorder %s51, %s52
      %p66 = scmp.eq.s32.totalorder %s44, 1
      %p67 = por %p65, %p66
      %p69 = scmp.ne.s32.totalorder %s52, %s68
      %p70 = scmp.eq.s32.totalorder %s44, 0
      %p71 = por %p69, %p70
      %s72 = ssub.s32 %s38, %s45
      %p73 = scmp.eq.s32.totalorder %s72, 0
      %s75 = sadd.s32 %s74, 1
      %s76 = scalar_select %p73, %s74, %s75
      %p79 = pneg %p73
      %p80 = scmp.eq.s32.totalorder %s38, 1
      %p81 = por %p79, %p80
      %p82 = scmp.ne.s32.totalorder %s74, %s77
      %p83 = scmp.eq.s32.totalorder %s38, 0
      %p84 = por %p82, %p83
      %p85 = scmp.ne.s32.totalorder %s74, %s77
      %p86 = scmp.eq.s32.totalorder %s43, 1
      %p87 = por %p85, %p86
      %p88 = scmp.ne.s32.totalorder %s77, %s78
      %p89 = scmp.eq.s32.totalorder %s43, 0
      %p90 = por %p88, %p89
      %p91 = scmp.ne.s32.totalorder %s77, %s78
      %p92 = scmp.eq.s32.totalorder %s44, 1
      %p93 = por %p91, %p92
      %p95 = scmp.ne.s32.totalorder %s78, %s94
      %p96 = scmp.eq.s32.totalorder %s44, 0
      %p97 = por %p95, %p96
      %s99 = sadd.s32 %s98, 1
      %p102 = scmp.eq.s32.totalorder %s38, 1
      %p103 = scmp.ne.s32.totalorder %s98, %s100
      %p104 = scmp.eq.s32.totalorder %s38, 0
      %p105 = por %p103, %p104
      %p106 = scmp.ne.s32.totalorder %s98, %s100
      %p107 = scmp.eq.s32.totalorder %s43, 1
      %p108 = por %p106, %p107
      %p109 = scmp.ne.s32.totalorder %s100, %s101
      %p110 = scmp.eq.s32.totalorder %s43, 0
      %p111 = por %p109, %p110
      %p112 = scmp.ne.s32.totalorder %s100, %s101
      %p113 = scmp.eq.s32.totalorder %s44, 1
      %p114 = por %p112, %p113
      %p116 = scmp.ne.s32.totalorder %s101, %s115
      %p117 = scmp.eq.s32.totalorder %s44, 0
      %p118 = por %p116, %p117
      %s120 = sadd.s32 %s119, 1
      %p123 = scmp.eq.s32.totalorder %s38, 1
      %p124 = scmp.ne.s32.totalorder %s119, %s121
      %p125 = scmp.eq.s32.totalorder %s38, 0
      %p126 = por %p124, %p125
      %p127 = scmp.ne.s32.totalorder %s119, %s121
      %p128 = scmp.eq.s32.totalorder %s43, 1
      %p129 = por %p127, %p128
      %p130 = scmp.ne.s32.totalorder %s121, %s122
      %p131 = scmp.eq.s32.totalorder %s43, 0
      %p132 = por %p130, %p131
      %p133 = scmp.ne.s32.totalorder %s121, %s122
      %p134 = scmp.eq.s32.totalorder %s44, 1
      %p135 = por %p133, %p134
      %p137 = scmp.ne.s32.totalorder %s122, %s136
      %p138 = scmp.eq.s32.totalorder %s44, 0
      %p139 = por %p137, %p138
      %s141 = sadd.s32 %s140, 1
      %p144 = scmp.eq.s32.totalorder %s38, 1
      %p145 = scmp.ne.s32.totalorder %s140, %s142
      %p146 = scmp.eq.s32.totalorder %s38, 0
      %p147 = por %p145, %p146
      %p148 = scmp.ne.s32.totalorder %s140, %s142
      %p149 = scmp.eq.s32.totalorder %s43, 1
      %p150 = por %p148, %p149
      %p151 = scmp.ne.s32.totalorder %s142, %s143
      %p152 = scmp.eq.s32.totalorder %s43, 0
      %p153 = por %p151, %p152
      %p154 = scmp.ne.s32.totalorder %s142, %s143
      %p155 = scmp.eq.s32.totalorder %s44, 1
      %p156 = por %p154, %p155
      %p158 = scmp.ne.s32.totalorder %s143, %s157
      %p159 = scmp.eq.s32.totalorder %s44, 0
      %p160 = por %p158, %p159
      %s162 = sadd.s32 %s161, 1
      %p165 = scmp.eq.s32.totalorder %s38, 1
      %p166 = scmp.ne.s32.totalorder %s161, %s163
      %p167 = scmp.eq.s32.totalorder %s38, 0
      %p168 = por %p166, %p167
      %p169 = scmp.ne.s32.totalorder %s161, %s163
      %p170 = scmp.eq.s32.totalorder %s43, 1
      %p171 = por %p169, %p170
      %p172 = scmp.ne.s32.totalorder %s163, %s164
      %p173 = scmp.eq.s32.totalorder %s43, 0
      %p174 = por %p172, %p173
      %p175 = scmp.ne.s32.totalorder %s163, %s164
      %p176 = scmp.eq.s32.totalorder %s44, 1
      %p177 = por %p175, %p176
      %p179 = scmp.ne.s32.totalorder %s164, %s178
      %p180 = scmp.eq.s32.totalorder %s44, 0
      %p181 = por %p179, %p180
      %s183 = sadd.s32 %s182, 1
      %p186 = scmp.eq.s32.totalorder %s38, 1
      %p187 = scmp.ne.s32.totalorder %s182, %s184
      %p188 = scmp.eq.s32.totalorder %s38, 0
      %p189 = por %p187, %p188
      %p190 = scmp.ne.s32.totalorder %s182, %s184
      %p191 = scmp.eq.s32.totalorder %s43, 1
      %p192 = por %p190, %p191
      %p193 = scmp.ne.s32.totalorder %s184, %s185
      %p194 = scmp.eq.s32.totalorder %s43, 0
      %p195 = por %p193, %p194
      %p196 = scmp.ne.s32.totalorder %s184, %s185
      %p197 = scmp.eq.s32.totalorder %s44, 1
      %p198 = por %p196, %p197
      %p200 = scmp.ne.s32.totalorder %s185, %s199
      %p201 = scmp.eq.s32.totalorder %s44, 0
      %p202 = por %p200, %p201
      %s204 = sadd.s32 %s203, 1
      %p207 = scmp.eq.s32.totalorder %s38, 1
      %p208 = scmp.ne.s32.totalorder %s203, %s205
      %p209 = scmp.eq.s32.totalorder %s38, 0
      %p210 = por %p208, %p209
      %p211 = scmp.ne.s32.totalorder %s203, %s205
      %p212 = scmp.eq.s32.totalorder %s43, 1
      %p213 = por %p211, %p212
      %p214 = scmp.ne.s32.totalorder %s205, %s206
      %p215 = scmp.eq.s32.totalorder %s43, 0
      %p216 = por %p214, %p215
      %p217 = scmp.ne.s32.totalorder %s205, %s206
      %p218 = scmp.eq.s32.totalorder %s44, 1
      %p219 = por %p217, %p218
      %p221 = scmp.ne.s32.totalorder %s206, %s220
      %p222 = scmp.eq.s32.totalorder %s44, 0
      %p223 = por %p221, %p222
      %s225 = sadd.s32 %s224, 1
      %p228 = scmp.eq.s32.totalorder %s38, 1
      %p229 = scmp.ne.s32.totalorder %s224, %s226
      %p230 = scmp.eq.s32.totalorder %s38, 0
      %p231 = por %p229, %p230
      %p232 = scmp.ne.s32.totalorder %s224, %s226
      %p233 = scmp.eq.s32.totalorder %s43, 1
      %p234 = por %p232, %p233
      %p235 = scmp.ne.s32.totalorder %s226, %s227
      %p236 = scmp.eq.s32.totalorder %s43, 0
      %p237 = por %p235, %p236
      %p238 = scmp.ne.s32.totalorder %s226, %s227
      %p239 = scmp.eq.s32.totalorder %s44, 1
      %p240 = por %p238, %p239
      %p242 = scmp.ne.s32.totalorder %s227, %s241
      %p243 = scmp.eq.s32.totalorder %s44, 0
      %p244 = por %p242, %p243
      %s246 = sadd.s32 %s245, 1
      %p249 = scmp.eq.s32.totalorder %s38, 1
      %p250 = scmp.ne.s32.totalorder %s245, %s247
      %p251 = scmp.eq.s32.totalorder %s38, 0
      %p252 = por %p250, %p251
      %p253 = scmp.ne.s32.totalorder %s245, %s247
      %p254 = scmp.eq.s32.totalorder %s43, 1
      %p255 = por %p253, %p254
      %p256 = scmp.ne.s32.totalorder %s247, %s248
      %p257 = scmp.eq.s32.totalorder %s43, 0
      %p258 = por %p256, %p257
      %p259 = scmp.ne.s32.totalorder %s247, %s248
      %p260 = scmp.eq.s32.totalorder %s44, 1
      %p261 = por %p259, %p260
      %p263 = scmp.ne.s32.totalorder %s248, %s262
      %p264 = scmp.eq.s32.totalorder %s44, 0
      %p265 = por %p263, %p264
      %s267 = sadd.s32 %s266, 1
      %p270 = scmp.eq.s32.totalorder %s38, 1
      %p271 = scmp.ne.s32.totalorder %s266, %s268
      %p272 = scmp.eq.s32.totalorder %s38, 0
      %p273 = por %p271, %p272
      %p274 = scmp.ne.s32.totalorder %s266, %s268
      %p275 = scmp.eq.s32.totalorder %s43, 1
      %p276 = por %p274, %p275
      %p277 = scmp.ne.s32.totalorder %s268, %s269
      %p278 = scmp.eq.s32.totalorder %s43, 0
      %p279 = por %p277, %p278
      %p280 = scmp.ne.s32.totalorder %s268, %s269
      %p281 = scmp.eq.s32.totalorder %s44, 1
      %p282 = por %p280, %p281
      %p284 = scmp.ne.s32.totalorder %s269, %s283
      %p285 = scmp.eq.s32.totalorder %s44, 0
      %p286 = por %p284, %p285
      %s288 = sadd.s32 %s287, 1
      %p291 = scmp.eq.s32.totalorder %s38, 1
      %p292 = scmp.ne.s32.totalorder %s287, %s289
      %p293 = scmp.eq.s32.totalorder %s38, 0
      %p294 = por %p292, %p293
      %p295 = scmp.ne.s32.totalorder %s287, %s289
      %p296 = scmp.eq.s32.totalorder %s43, 1
      %p297 = por %p295, %p296
      %p298 = scmp.ne.s32.totalorder %s289, %s290
      %p299 = scmp.eq.s32.totalorder %s43, 0
      %p300 = por %p298, %p299
      %p301 = scmp.ne.s32.totalorder %s289, %s290
      %p302 = scmp.eq.s32.totalorder %s44, 1
      %p303 = por %p301, %p302
      %p305 = scmp.ne.s32.totalorder %s290, %s304
      %p306 = scmp.eq.s32.totalorder %s44, 0
      %p307 = por %p305, %p306
      %s308 = ssub.s32 %s38, %s45
      %p309 = scmp.eq.s32.totalorder %s308, 0
      %s311 = sadd.s32 %s310, 1
      %s312 = scalar_select %p309, %s310, %s311
      %p315 = pneg %p309
      %p316 = scmp.eq.s32.totalorder %s38, 1
      %p317 = por %p315, %p316
      %p318 = scmp.ne.s32.totalorder %s310, %s313
      %p319 = scmp.eq.s32.totalorder %s38, 0
      %p320 = por %p318, %p319
      %p321 = scmp.ne.s32.totalorder %s310, %s313
      %p322 = scmp.eq.s32.totalorder %s43, 1
      %p323 = por %p321, %p322
      %p324 = scmp.ne.s32.totalorder %s313, %s314
      %p325 = scmp.eq.s32.totalorder %s43, 0
      %p326 = por %p324, %p325
      %p327 = scmp.ne.s32.totalorder %s313, %s314
      %p328 = scmp.eq.s32.totalorder %s44, 1
      %p329 = por %p327, %p328
      %p331 = scmp.ne.s32.totalorder %s314, %s330
      %p332 = scmp.eq.s32.totalorder %s44, 0
      %p333 = por %p331, %p332
      %s334 = ssub.s32 %s38, %s45
      %p335 = scmp.eq.s32.totalorder %s334, 0
      %s337 = sadd.s32 %s336, 1
      %s338 = scalar_select %p335, %s336, %s337
      %p341 = pneg %p335
      %p342 = scmp.eq.s32.totalorder %s38, 1
      %p343 = por %p341, %p342
      %p344 = scmp.ne.s32.totalorder %s336, %s339
      %p345 = scmp.eq.s32.totalorder %s38, 0
      %p346 = por %p344, %p345
      %p347 = scmp.ne.s32.totalorder %s336, %s339
      %p348 = scmp.eq.s32.totalorder %s43, 1
      %p349 = por %p347, %p348
      %p350 = scmp.ne.s32.totalorder %s339, %s340
      %p351 = scmp.eq.s32.totalorder %s43, 0
      %p352 = por %p350, %p351
      %p353 = scmp.ne.s32.totalorder %s339, %s340
      %p354 = scmp.eq.s32.totalorder %s44, 1
      %p355 = por %p353, %p354
      %p357 = scmp.ne.s32.totalorder %s340, %s356
      %p358 = scmp.eq.s32.totalorder %s44, 0
      %p359 = por %p357, %p358
      %p360 = scmp.le.s32.totalorder 1, %s38
      %p361 = scmp.lt.s32.totalorder %s38, 3
      %p362 = pnand %p360, %p361
      %p363 = pneg %p362
      // Predicated region
      $region9: #{tpu_custom_call.1} parent=5 // pred_check
        _
      $region10: #{tpu_custom_call.1} parent=5 // pred_check_branch
        %365 = sbr.rel (%p362) target = $region12
      $region11: #{tpu_custom_call.1} parent=5 // pred_region
        %s366 = ssub.s32 %s38, 1
        // Predicated region
        $region13: #{tpu_custom_call.1} parent=11 // pred_check
          %p367 = pneg %p111
        $region14: #{tpu_custom_call.1} parent=11 // pred_check_branch
          %369 = sbr.rel (%p367) target = $region16
        $region15: #{tpu_custom_call.1} parent=11 // pred_region
          _
        $region16: #{tpu_custom_call.1} parent=11 // pred_fallthru
          _
        // Predicated region
        $region17: #{tpu_custom_call.1} parent=11 // pred_check
          %p370 = pneg %p132
        $region18: #{tpu_custom_call.1} parent=11 // pred_check_branch
          %372 = sbr.rel (%p370) target = $region20
        $region19: #{tpu_custom_call.1} parent=11 // pred_region
          %374 = vsyncadd [#allocation5], 0
          %s375 = sshll.u32 %s4, 4
          %s376 = int_to_ptr.hbm [resolvable:$true] %s375
          %s377 = sshll.u32 [#allocation4], 4
          %s378 = int_to_ptr.vmem [resolvable:$true] %s377
          %383 = dma.hbm_to_vmem [thread:$0]  %s376, 256, %s378, [#allocation5], 128, 128, 8
        $region20: #{tpu_custom_call.1} parent=11 // pred_fallthru
          _
        // Predicated region
        $region21: #{tpu_custom_call.1} parent=11 // pred_check
          %p384 = pneg %p153
        $region22: #{tpu_custom_call.1} parent=11 // pred_check_branch
          %386 = sbr.rel (%p384) target = $region24
        $region23: #{tpu_custom_call.1} parent=11 // pred_region
          %388 = vsyncadd [#allocation8], 0
          %s389 = sshll.u32 %s5, 4
          %s390 = int_to_ptr.hbm [resolvable:$true] %s389
          %s391 = sshll.u32 [#allocation7], 4
          %s392 = int_to_ptr.vmem [resolvable:$true] %s391
          %397 = dma.hbm_to_vmem [thread:$0]  %s390, 6144, %s392, [#allocation8], 384, 384, 24
        $region24: #{tpu_custom_call.1} parent=11 // pred_fallthru
          _
        // Predicated region
        $region25: #{tpu_custom_call.1} parent=11 // pred_check
          %p398 = pneg %p174
        $region26: #{tpu_custom_call.1} parent=11 // pred_check_branch
          %400 = sbr.rel (%p398) target = $region28
        $region27: #{tpu_custom_call.1} parent=11 // pred_region
          %402 = vsyncadd [#allocation8], 0
          %s403 = sshll.u32 %s6, 4
          %s404 = int_to_ptr.hbm [resolvable:$true] %s403
          %s405 = sshll.u32 [#allocation9], 4
          %s406 = int_to_ptr.vmem [resolvable:$true] %s405
          %411 = dma.hbm_to_vmem [thread:$0]  %s404, 2048, %s406, [#allocation8], 128, 128, 8
        $region28: #{tpu_custom_call.1} parent=11 // pred_fallthru
          _
        // Predicated region
        $region29: #{tpu_custom_call.1} parent=11 // pred_check
          %p412 = pneg %p195
        $region30: #{tpu_custom_call.1} parent=11 // pred_check_branch
          %414 = sbr.rel (%p412) target = $region32
        $region31: #{tpu_custom_call.1} parent=11 // pred_region
          _
        $region32: #{tpu_custom_call.1} parent=11 // pred_fallthru
          _
        // Predicated region
        $region33: #{tpu_custom_call.1} parent=11 // pred_check
          %p415 = pneg %p216
        $region34: #{tpu_custom_call.1} parent=11 // pred_check_branch
          %417 = sbr.rel (%p415) target = $region36
        $region35: #{tpu_custom_call.1} parent=11 // pred_region
          _
        $region36: #{tpu_custom_call.1} parent=11 // pred_fallthru
          _
        // Predicated region
        $region37: #{tpu_custom_call.1} parent=11 // pred_check
          %p418 = pneg %p237
        $region38: #{tpu_custom_call.1} parent=11 // pred_check_branch
          %420 = sbr.rel (%p418) target = $region40
        $region39: #{tpu_custom_call.1} parent=11 // pred_region
          %422 = vsyncadd [#allocation11], 0
          %s423 = sshll.u32 %s9, 4
          %s424 = int_to_ptr.hbm [resolvable:$true] %s423
          %s425 = sshll.u32 [#allocation10], 4
          %s426 = int_to_ptr.vmem [resolvable:$true] %s425
          %431 = dma.hbm_to_vmem [thread:$0]  %s424, 8192, %s426, [#allocation11], 512, 512, 32
        $region40: #{tpu_custom_call.1} parent=11 // pred_fallthru
          _
        // Predicated region
        $region41: #{tpu_custom_call.1} parent=11 // pred_check
          %p432 = pneg %p258
        $region42: #{tpu_custom_call.1} parent=11 // pred_check_branch
          %434 = sbr.rel (%p432) target = $region44
        $region43: #{tpu_custom_call.1} parent=11 // pred_region
          %436 = vsyncadd [#allocation11], 0
          %s437 = sshll.u32 %s10, 4
          %s438 = int_to_ptr.hbm [resolvable:$true] %s437
          %s439 = sshll.u32 [#allocation12], 4
          %s440 = int_to_ptr.vmem [resolvable:$true] %s439
          %445 = dma.hbm_to_vmem [thread:$0]  %s438, 8192, %s440, [#allocation11], 128, 128, 8
        $region44: #{tpu_custom_call.1} parent=11 // pred_fallthru
          _
        // Predicated region
        $region45: #{tpu_custom_call.1} parent=11 // pred_check
          %p446 = pneg %p279
        $region46: #{tpu_custom_call.1} parent=11 // pred_check_branch
          %448 = sbr.rel (%p446) target = $region48
        $region47: #{tpu_custom_call.1} parent=11 // pred_region
          _
        $region48: #{tpu_custom_call.1} parent=11 // pred_fallthru
          _
        // Predicated region
        $region49: #{tpu_custom_call.1} parent=11 // pred_check
          %p449 = pneg %p300
        $region50: #{tpu_custom_call.1} parent=11 // pred_check_branch
          %451 = sbr.rel (%p449) target = $region52
        $region51: #{tpu_custom_call.1} parent=11 // pred_region
          _
        $region52: #{tpu_custom_call.1} parent=11 // pred_fallthru
          _
      $region12: #{tpu_custom_call.1} parent=5 // pred_fallthru
        _
      %p452 = scmp.lt.s32.totalorder %s38, 2
      // Predicated region
      $region53: #{tpu_custom_call.1} parent=5 // pred_check
        %p453 = pneg %p452
      $region54: #{tpu_custom_call.1} parent=5 // pred_check_branch
        %455 = sbr.rel (%p453) target = $region56
      $region55: #{tpu_custom_call.1} parent=5 // pred_region
        // Predicated region
        $region57: #{tpu_custom_call.1} parent=55 // pred_check
          %p456 = pneg %p58
        $region58: #{tpu_custom_call.1} parent=55 // pred_check_branch
          %458 = sbr.rel (%p456) target = $region60
        $region59: #{tpu_custom_call.1} parent=55 // pred_region
          %p459 = scmp.lt.s32.totalorder %s38, 1
          %s460 = scalar_select %p459, %s38, 1
          %s461 = smul.addr %s460, 2
          %s462 = smul.addr %s461, 8
          %s463 = scalar_lea.vmem %s1, %s462
        $region60: #{tpu_custom_call.1} parent=55 // pred_fallthru
          _
        // Predicated region
        $region61: #{tpu_custom_call.1} parent=55 // pred_check
          %p464 = pneg %p84
        $region62: #{tpu_custom_call.1} parent=55 // pred_check_branch
          %466 = sbr.rel (%p464) target = $region64
        $region63: #{tpu_custom_call.1} parent=55 // pred_region
          %p467 = scmp.lt.s32.totalorder %s38, 1
          %s468 = scalar_select %p467, %s38, 1
          %s469 = smul.addr %s468, 2
          %s470 = smul.addr %s469, 8
          %s471 = scalar_lea.vmem %s2, %s470
        $region64: #{tpu_custom_call.1} parent=55 // pred_fallthru
          _
      $region56: #{tpu_custom_call.1} parent=5 // pred_fallthru
        _
      %p472 = scmp.le.s32.totalorder 1, %s38
      %p473 = scmp.lt.s32.totalorder %s38, 3
      %p474 = pnand %p472, %p473
      %p475 = pneg %p474
      // Predicated region
      $region65: #{tpu_custom_call.1} parent=5 // pred_check
        _
      $region66: #{tpu_custom_call.1} parent=5 // pred_check_branch
        %477 = sbr.rel (%p474) target = $region68
      $region67: #{tpu_custom_call.1} parent=5 // pred_region
        %s478 = ssub.s32 %s38, 1
        // Predicated region
        $region69: #{tpu_custom_call.1} parent=67 // pred_check
          %p479 = pneg %p132
        $region70: #{tpu_custom_call.1} parent=67 // pred_check_branch
          %481 = sbr.rel (%p479) target = $region72
        $region71: #{tpu_custom_call.1} parent=67 // pred_region
          %483 = dma.done [#allocation5], 256
        $region72: #{tpu_custom_call.1} parent=67 // pred_fallthru
          _
        // Predicated region
        $region73: #{tpu_custom_call.1} parent=67 // pred_check
          %p484 = pneg %p153
        $region74: #{tpu_custom_call.1} parent=67 // pred_check_branch
          %486 = sbr.rel (%p484) target = $region76
        $region75: #{tpu_custom_call.1} parent=67 // pred_region
          %488 = dma.done [#allocation8], 6144
        $region76: #{tpu_custom_call.1} parent=67 // pred_fallthru
          _
        // Predicated region
        $region77: #{tpu_custom_call.1} parent=67 // pred_check
          %p489 = pneg %p174
        $region78: #{tpu_custom_call.1} parent=67 // pred_check_branch
          %491 = sbr.rel (%p489) target = $region80
        $region79: #{tpu_custom_call.1} parent=67 // pred_region
          %493 = dma.done [#allocation8], 2048
        $region80: #{tpu_custom_call.1} parent=67 // pred_fallthru
          _
        // Predicated region
        $region81: #{tpu_custom_call.1} parent=67 // pred_check
          %p494 = pneg %p237
        $region82: #{tpu_custom_call.1} parent=67 // pred_check_branch
          %496 = sbr.rel (%p494) target = $region84
        $region83: #{tpu_custom_call.1} parent=67 // pred_region
          %498 = dma.done [#allocation11], 8192
        $region84: #{tpu_custom_call.1} parent=67 // pred_fallthru
          _
        // Predicated region
        $region85: #{tpu_custom_call.1} parent=67 // pred_check
          %p499 = pneg %p258
        $region86: #{tpu_custom_call.1} parent=67 // pred_check_branch
          %501 = sbr.rel (%p499) target = $region88
        $region87: #{tpu_custom_call.1} parent=67 // pred_region
          %503 = dma.done [#allocation11], 8192
        $region88: #{tpu_custom_call.1} parent=67 // pred_fallthru
          _
        %p504 = scmp.lt.s32.totalorder %s43, 1
        %s505 = scalar_select %p504, %s43, 1
        %s506 = smul.addr %s505, 2
        %s507 = smul.addr %s506, 8
        %s508 = scalar_lea.vmem %s1, %s507
        %p509 = pneg %p64
        %p510 = pneg %p61
        %p511 = scmp.lt.s32.totalorder %s43, 1
        %s512 = scalar_select %p511, %s43, 1
        %s513 = smul.addr %s512, 2
        %s514 = smul.addr %s513, 8
        %s515 = scalar_lea.vmem %s2, %s514
        %p516 = pneg %p90
        %p517 = pneg %p87
        %p518 = pneg %p111
        %p519 = pneg %p108
        %p520 = pneg %p132
        %p521 = pneg %p129
        %p522 = pneg %p153
        %p523 = pneg %p150
        %p524 = pneg %p174
        %p525 = pneg %p171
        %p526 = pneg %p195
        %p527 = pneg %p192
        %p528 = pneg %p216
        %p529 = pneg %p213
        %p530 = pneg %p237
        %p531 = pneg %p234
        %p532 = pneg %p258
        %p533 = pneg %p255
        %p534 = pneg %p279
        %p535 = pneg %p276
        %p536 = pneg %p300
        %p537 = pneg %p297
        %p538 = pneg %p326
        %p539 = pneg %p323
        %s540 = sand.u32 %s313, 1
        %s541 = scalar_lea.sflag [#allocation6], %s540
        %s542 = sand.u32 %s313, 1
        %s543 = scalar_lea.vmem [#allocation13], %s542
        %p544 = pneg %p352
        %p545 = pneg %p349
        %s546 = sand.u32 %s339, 1
        %s547 = scalar_lea.sflag [#allocation15], %s546
        %s548 = sand.u32 %s339, 1
        %s549 = smul.addr %s548, 128
        %s550 = scalar_lea.vmem [#allocation14], %s549
        %p551 = scmp.lt.s32.totalorder %s43, 1
        %s552 = scalar_select %p551, %s43, 1
        %s553 = smul.addr %s552, 2
        %s554 = smul.addr %s553, 8
        %s555 = scalar_lea.vmem %s1, %s554
        %p556 = scmp.lt.s32.totalorder %s43, 1
        %s557 = scalar_select %p556, %s43, 1
        %s558 = smul.addr %s557, 2
        %s559 = smul.addr %s558, 8
        %s560 = scalar_lea.vmem %s2, %s559
        %s561 = sld [smem:[#allocation3 + %s43]]
        %v562 = vld [vmem:[%s555] sm:$0xff]
        %v563 = vld [vmem:[%s555 + $0x8] sm:$0xff]
        %v564 = vld [vmem:[%s3] sm:$0x3]
        %vm565 = vcmask 15360
        %v567 = vsel %vm565, %v562, 0
        %v570 = vsel %vm565, %v563, 0
        %vm572 = vcmask 1041408
        %v574 = vsel %vm572, %v564, 0
        %576 = vmatpush.msra.mxu0 0.0
        %577 = vmatpush.msra.mxu0 0.0
        %578 = vmatpush.msra.mxu0 0.0
        %579 = vmatpush.msra.mxu0 0.0
        %580 = vmatpush.msra.mxu0 0.0
        %581 = vmatpush.msra.mxu0 0.0
        %582 = vmatpush.msra.mxu0 0.0
        %583 = vmatpush.msra.mxu0 0.0
        %584 = vmatpush.msra.mxu0 0.0
        %585 = vmatpush.msra.mxu0 0.0
        %586 = vmatpush.msra.mxu0 0.0
        %587 = vmatpush.msra.mxu0 0.0
        %588 = vmatpush.msra.mxu0 0.0
        %589 = vmatpush.msra.mxu0 0.0
        %590 = vmatpush.msra.mxu0 0.0
        %591 = vmatpush.msra.mxu0 %v574
        %592 = vmatmul.f32.gmra.mxu0 %v567
        %v593 = vpop.f32.mrf.mxu0
        %v594 = vadd.f32 0.0, %v593
        %595 = vmatmul.f32.gmra.mxu0 %v570
        %v596 = vpop.f32.mrf.mxu0
        %v597 = vadd.f32 0.0, %v596
        %598 = vdwg.mxu0
        %v599 = vlaneseq
        %v600 = vand.u32 %v599, 127
        %v601 = vstv %s561
        %vm602 = vcmp.ge.s32.totalorder %v600, %v601
        %v603 = vld [vmem:[%s560] sm:$0xff]
        %v604 = vld [vmem:[%s560 + $0x8] sm:$0xff]
        %vm605 = vcmask 130048
        %v606 = vsel %vm605, %v603, -inf
        %607 = vmax.xlane.f32.xlu0 %v606
        %v608 = vpop.xlane.xlu0 %607
        %v609 = vsel %vm605, %v604, -inf
        %610 = vmax.xlane.f32.xlu0 %v609
        %v611 = vpop.xlane.xlu0 %610
        %v612 = vsub.f32 %v603, %v608
        %v613 = vsub.f32 %v604, %v611
        %v614 = vmul.f32 %v612, 1.442695
        %v615 = vpow.pop %v614
        %v616 = vmul.f32 %v613, 1.442695
        %v617 = vpow.pop %v616
        %v618 = vsel %vm605, %v615, 0.0
        %619 = vadd.xlane.f32.xlu0 %v618
        %v620 = vpop.xlane.xlu0 %619
        %v621 = vsel %vm605, %v617, 0.0
        %622 = vadd.xlane.f32.xlu0 %v621
        %v623 = vpop.xlane.xlu0 %622
        %v624 = vrcp.pop %v620
        %v625 = vrcp.pop %v623
        %v626 = vmul.f32 %v615, %v624
        %v627 = vmul.f32 %v617, %v625
        %v628 = vld [vmem:[#allocation4] sm:$0xff]
        %v629 = vld [vmem:[#allocation4 + $0x8] sm:$0xff]
        %v630 = vmul.f32 %v626, %v628
        %v631 = vmul.f32 %v627, %v629
        %v632 = vld [vmem:[#allocation7] sm:$0xff]
        %v633 = vld [vmem:[#allocation7 + $0x8] sm:$0xff]
        %v634 = vld [vmem:[#allocation7 + $0x10] sm:$0xff]
        %v635 = vld [vmem:[#allocation7 + $0x18] sm:$0xff]
        %v636 = vld [vmem:[#allocation7 + $0x20] sm:$0xff]
        %v637 = vld [vmem:[#allocation7 + $0x28] sm:$0xff]
        %v638 = vld [vmem:[#allocation7 + $0x30] sm:$0xff]
        %v639 = vld [vmem:[#allocation7 + $0x38] sm:$0xff]
        %v640 = vld [vmem:[#allocation7 + $0x40] sm:$0xff]
        %v641 = vld [vmem:[#allocation7 + $0x48] sm:$0xff]
        %v642 = vld [vmem:[#allocation7 + $0x50] sm:$0xff]
        %v643 = vld [vmem:[#allocation7 + $0x58] sm:$0xff]
        %v644 = vld [vmem:[#allocation7 + $0x60] sm:$0xff]
        %v645 = vld [vmem:[#allocation7 + $0x68] sm:$0xff]
        %v646 = vld [vmem:[#allocation7 + $0x70] sm:$0xff]
        %v647 = vld [vmem:[#allocation7 + $0x78] sm:$0xff]
        %v648 = vld [vmem:[#allocation7 + $0x80] sm:$0xff]
        %v649 = vld [vmem:[#allocation7 + $0x88] sm:$0xff]
        %v650 = vld [vmem:[#allocation7 + $0x90] sm:$0xff]
        %v651 = vld [vmem:[#allocation7 + $0x98] sm:$0xff]
        %v652 = vld [vmem:[#allocation7 + $0xa0] sm:$0xff]
        %v653 = vld [vmem:[#allocation7 + $0xa8] sm:$0xff]
        %v654 = vld [vmem:[#allocation7 + $0xb0] sm:$0xff]
        %v655 = vld [vmem:[#allocation7 + $0xb8] sm:$0xff]
        %v656 = vld [vmem:[#allocation7 + $0xc0] sm:$0xff]
        %v657 = vld [vmem:[#allocation7 + $0xc8] sm:$0xff]
        %v658 = vld [vmem:[#allocation7 + $0xd0] sm:$0xff]
        %v659 = vld [vmem:[#allocation7 + $0xd8] sm:$0xff]
        %v660 = vld [vmem:[#allocation7 + $0xe0] sm:$0xff]
        %v661 = vld [vmem:[#allocation7 + $0xe8] sm:$0xff]
        %v662 = vld [vmem:[#allocation7 + $0xf0] sm:$0xff]
        %v663 = vld [vmem:[#allocation7 + $0xf8] sm:$0xff]
        %v664 = vld [vmem:[#allocation7 + $0x100] sm:$0xff]
        %v665 = vld [vmem:[#allocation7 + $0x108] sm:$0xff]
        %v666 = vld [vmem:[#allocation7 + $0x110] sm:$0xff]
        %v667 = vld [vmem:[#allocation7 + $0x118] sm:$0xff]
        %v668 = vld [vmem:[#allocation7 + $0x120] sm:$0xff]
        %v669 = vld [vmem:[#allocation7 + $0x128] sm:$0xff]
        %v670 = vld [vmem:[#allocation7 + $0x130] sm:$0xff]
        %v671 = vld [vmem:[#allocation7 + $0x138] sm:$0xff]
        %v672 = vld [vmem:[#allocation7 + $0x140] sm:$0xff]
        %v673 = vld [vmem:[#allocation7 + $0x148] sm:$0xff]
        %v674 = vld [vmem:[#allocation7 + $0x150] sm:$0xff]
        %v675 = vld [vmem:[#allocation7 + $0x158] sm:$0xff]
        %v676 = vld [vmem:[#allocation7 + $0x160] sm:$0xff]
        %v677 = vld [vmem:[#allocation7 + $0x168] sm:$0xff]
        %v678 = vld [vmem:[#allocation7 + $0x170] sm:$0xff]
        %v679 = vld [vmem:[#allocation7 + $0x178] sm:$0xff]
        %680 = vmatpush.msra.mxu0 %v677
        %681 = vmatpush.msra.mxu0 %v674
        %682 = vmatpush.msra.mxu0 %v671
        %683 = vmatpush.msra.mxu0 %v668
        %684 = vmatpush.msra.mxu0 %v665
        %685 = vmatpush.msra.mxu0 %v662
        %686 = vmatpush.msra.mxu0 %v659
        %687 = vmatpush.msra.mxu0 %v656
        %688 = vmatpush.msra.mxu0 %v653
        %689 = vmatpush.msra.mxu0 %v650
        %690 = vmatpush.msra.mxu0 %v647
        %691 = vmatpush.msra.mxu0 %v644
        %692 = vmatpush.msra.mxu0 %v641
        %693 = vmatpush.msra.mxu0 %v638
        %694 = vmatpush.msra.mxu0 %v635
        %695 = vmatpush.msra.mxu0 %v632
        %696 = vmatmul.f32.gmra.mxu0 %v594
        %v697 = vpop.f32.mrf.mxu0
        %v698 = vadd.f32 0.0, %v697
        %699 = vmatmul.f32.gmra.mxu0 %v597
        %v700 = vpop.f32.mrf.mxu0
        %v701 = vadd.f32 0.0, %v700
        %702 = vdwg.mxu0
        %703 = vmatpush.msra.mxu0 %v678
        %704 = vmatpush.msra.mxu0 %v675
        %705 = vmatpush.msra.mxu0 %v672
        %706 = vmatpush.msra.mxu0 %v669
        %707 = vmatpush.msra.mxu0 %v666
        %708 = vmatpush.msra.mxu0 %v663
        %709 = vmatpush.msra.mxu0 %v660
        %710 = vmatpush.msra.mxu0 %v657
        %711 = vmatpush.msra.mxu0 %v654
        %712 = vmatpush.msra.mxu0 %v651
        %713 = vmatpush.msra.mxu0 %v648
        %714 = vmatpush.msra.mxu0 %v645
        %715 = vmatpush.msra.mxu0 %v642
        %716 = vmatpush.msra.mxu0 %v639
        %717 = vmatpush.msra.mxu0 %v636
        %718 = vmatpush.msra.mxu0 %v633
        %719 = vmatmul.f32.gmra.mxu0 %v594
        %v720 = vpop.f32.mrf.mxu0
        %v721 = vadd.f32 0.0, %v720
        %722 = vmatmul.f32.gmra.mxu0 %v597
        %v723 = vpop.f32.mrf.mxu0
        %v724 = vadd.f32 0.0, %v723
        %725 = vdwg.mxu0
        %726 = vmatpush.msra.mxu0 %v679
        %727 = vmatpush.msra.mxu0 %v676
        %728 = vmatpush.msra.mxu0 %v673
        %729 = vmatpush.msra.mxu0 %v670
        %730 = vmatpush.msra.mxu0 %v667
        %731 = vmatpush.msra.mxu0 %v664
        %732 = vmatpush.msra.mxu0 %v661
        %733 = vmatpush.msra.mxu0 %v658
        %734 = vmatpush.msra.mxu0 %v655
        %735 = vmatpush.msra.mxu0 %v652
        %736 = vmatpush.msra.mxu0 %v649
        %737 = vmatpush.msra.mxu0 %v646
        %738 = vmatpush.msra.mxu0 %v643
        %739 = vmatpush.msra.mxu0 %v640
        %740 = vmatpush.msra.mxu0 %v637
        %741 = vmatpush.msra.mxu0 %v634
        %742 = vmatmul.f32.gmra.mxu0 %v594
        %v743 = vpop.f32.mrf.mxu0
        %v744 = vadd.f32 0.0, %v743
        %745 = vmatmul.f32.gmra.mxu0 %v597
        %v746 = vpop.f32.mrf.mxu0
        %v747 = vadd.f32 0.0, %v746
        %748 = vdwg.mxu0
        %751 = vrot.lane.b32.xlu0 %v698, 112
        %v752 = vpop.permute.xlu0 %751
        %753 = vrot.lane.b32.xlu0 %v701, 112
        %v754 = vpop.permute.xlu0 %753
        %755 = vrot.lane.b32.xlu0 %v698, 96
        %v756 = vpop.permute.xlu0 %755
        %757 = vrot.lane.b32.xlu0 %v701, 96
        %v758 = vpop.permute.xlu0 %757
        %759 = vrot.lane.b32.xlu0 %v698, 80
        %v760 = vpop.permute.xlu0 %759
        %761 = vrot.lane.b32.xlu0 %v701, 80
        %v762 = vpop.permute.xlu0 %761
        %763 = vrot.lane.b32.xlu0 %v698, 64
        %v764 = vpop.permute.xlu0 %763
        %765 = vrot.lane.b32.xlu0 %v701, 64
        %v766 = vpop.permute.xlu0 %765
        %767 = vrot.lane.b32.xlu0 %v698, 48
        %v768 = vpop.permute.xlu0 %767
        %769 = vrot.lane.b32.xlu0 %v701, 48
        %v770 = vpop.permute.xlu0 %769
        %771 = vrot.lane.b32.xlu0 %v698, 32
        %v772 = vpop.permute.xlu0 %771
        %773 = vrot.lane.b32.xlu0 %v701, 32
        %v774 = vpop.permute.xlu0 %773
        %775 = vrot.lane.b32.xlu0 %v698, 16
        %v776 = vpop.permute.xlu0 %775
        %777 = vrot.lane.b32.xlu0 %v701, 16
        %v778 = vpop.permute.xlu0 %777
        %781 = vrot.lane.b32.xlu0 %v721, 112
        %v782 = vpop.permute.xlu0 %781
        %783 = vrot.lane.b32.xlu0 %v724, 112
        %v784 = vpop.permute.xlu0 %783
        %785 = vrot.lane.b32.xlu0 %v721, 96
        %v786 = vpop.permute.xlu0 %785
        %787 = vrot.lane.b32.xlu0 %v724, 96
        %v788 = vpop.permute.xlu0 %787
        %789 = vrot.lane.b32.xlu0 %v721, 80
        %v790 = vpop.permute.xlu0 %789
        %791 = vrot.lane.b32.xlu0 %v724, 80
        %v792 = vpop.permute.xlu0 %791
        %793 = vrot.lane.b32.xlu0 %v721, 64
        %v794 = vpop.permute.xlu0 %793
        %795 = vrot.lane.b32.xlu0 %v724, 64
        %v796 = vpop.permute.xlu0 %795
        %797 = vrot.lane.b32.xlu0 %v721, 48
        %v798 = vpop.permute.xlu0 %797
        %799 = vrot.lane.b32.xlu0 %v724, 48
        %v800 = vpop.permute.xlu0 %799
        %801 = vrot.lane.b32.xlu0 %v721, 32
        %v802 = vpop.permute.xlu0 %801
        %803 = vrot.lane.b32.xlu0 %v724, 32
        %v804 = vpop.permute.xlu0 %803
        %805 = vrot.lane.b32.xlu0 %v721, 16
        %v806 = vpop.permute.xlu0 %805
        %807 = vrot.lane.b32.xlu0 %v724, 16
        %v808 = vpop.permute.xlu0 %807
        %811 = vrot.lane.b32.xlu0 %v744, 112
        %v812 = vpop.permute.xlu0 %811
        %813 = vrot.lane.b32.xlu0 %v747, 112
        %v814 = vpop.permute.xlu0 %813
        %817 = vrot.lane.b32.xlu0 %v744, 96
        %v818 = vpop.permute.xlu0 %817
        %819 = vrot.lane.b32.xlu0 %v747, 96
        %v820 = vpop.permute.xlu0 %819
        %823 = vrot.lane.b32.xlu0 %v744, 80
        %v824 = vpop.permute.xlu0 %823
        %825 = vrot.lane.b32.xlu0 %v747, 80
        %v826 = vpop.permute.xlu0 %825
        %829 = vrot.lane.b32.xlu0 %v744, 64
        %v830 = vpop.permute.xlu0 %829
        %831 = vrot.lane.b32.xlu0 %v747, 64
        %v832 = vpop.permute.xlu0 %831
        %835 = vrot.lane.b32.xlu0 %v744, 48
        %v836 = vpop.permute.xlu0 %835
        %837 = vrot.lane.b32.xlu0 %v747, 48
        %v838 = vpop.permute.xlu0 %837
        %841 = vrot.lane.b32.xlu0 %v744, 32
        %v842 = vpop.permute.xlu0 %841
        %843 = vrot.lane.b32.xlu0 %v747, 32
        %v844 = vpop.permute.xlu0 %843
        %847 = vrot.lane.b32.xlu0 %v744, 16
        %v848 = vpop.permute.xlu0 %847
        %849 = vrot.lane.b32.xlu0 %v747, 16
        %v850 = vpop.permute.xlu0 %849
        %v853 = vsel %vm605, %v698, 0
        %v855 = vsel %vm605, %v701, 0
        %v857 = vsel %vm605, %v721, 0
        %v859 = vsel %vm605, %v724, 0
        %861 = vmatpush.xpose.msra.mxu0 0.0
        %862 = vmatpush.xpose.msra.mxu0 0.0
        %863 = vmatpush.xpose.msra.mxu0 0.0
        %864 = vmatpush.xpose.msra.mxu0 0.0
        %865 = vmatpush.xpose.msra.mxu0 0.0
        %866 = vmatpush.xpose.msra.mxu0 0.0
        %867 = vmatpush.xpose.msra.mxu0 0.0
        %868 = vmatpush.xpose.msra.mxu0 0.0
        %869 = vmatpush.xpose.msra.mxu0 0.0
        %870 = vmatpush.xpose.msra.mxu0 0.0
        %871 = vmatpush.xpose.msra.mxu0 0.0
        %872 = vmatpush.xpose.msra.mxu0 0.0
        %873 = vmatpush.xpose.msra.mxu0 0.0
        %874 = vmatpush.xpose.msra.mxu0 0.0
        %875 = vmatpush.xpose.msra.mxu0 %v859
        %876 = vmatpush.xpose.msra.mxu0 %v857
        %877 = vmatmul.f32.gmra.mxu0 %v853
        %v878 = vpop.f32.mrf.mxu0
        %v879 = vadd.f32 0.0, %v878
        %880 = vmatmul.f32.gmra.mxu0 %v855
        %v881 = vpop.f32.mrf.mxu0
        %v882 = vadd.f32 0.0, %v881
        %883 = vdwg.mxu0
        %v884 = vsel %vm605, %v752, 0
        %v886 = vsel %vm605, %v754, 0
        %v888 = vsel %vm605, %v782, 0
        %v890 = vsel %vm605, %v784, 0
        %892 = vmatpush.xpose.msra.mxu0 0.0
        %893 = vmatpush.xpose.msra.mxu0 0.0
        %894 = vmatpush.xpose.msra.mxu0 0.0
        %895 = vmatpush.xpose.msra.mxu0 0.0
        %896 = vmatpush.xpose.msra.mxu0 0.0
        %897 = vmatpush.xpose.msra.mxu0 0.0
        %898 = vmatpush.xpose.msra.mxu0 0.0
        %899 = vmatpush.xpose.msra.mxu0 0.0
        %900 = vmatpush.xpose.msra.mxu0 0.0
        %901 = vmatpush.xpose.msra.mxu0 0.0
        %902 = vmatpush.xpose.msra.mxu0 0.0
        %903 = vmatpush.xpose.msra.mxu0 0.0
        %904 = vmatpush.xpose.msra.mxu0 0.0
        %905 = vmatpush.xpose.msra.mxu0 0.0
        %906 = vmatpush.xpose.msra.mxu0 %v890
        %907 = vmatpush.xpose.msra.mxu0 %v888
        %908 = vmatmul.f32.gmra.mxu0 %v884
        %v909 = vpop.f32.mrf.mxu0
        %v910 = vadd.f32 0.0, %v909
        %911 = vmatmul.f32.gmra.mxu0 %v886
        %v912 = vpop.f32.mrf.mxu0
        %v913 = vadd.f32 0.0, %v912
        %914 = vdwg.mxu0
        %v915 = vsel %vm605, %v756, 0
        %v917 = vsel %vm605, %v758, 0
        %v919 = vsel %vm605, %v786, 0
        %v921 = vsel %vm605, %v788, 0
        %923 = vmatpush.xpose.msra.mxu0 0.0
        %924 = vmatpush.xpose.msra.mxu0 0.0
        %925 = vmatpush.xpose.msra.mxu0 0.0
        %926 = vmatpush.xpose.msra.mxu0 0.0
        %927 = vmatpush.xpose.msra.mxu0 0.0
        %928 = vmatpush.xpose.msra.mxu0 0.0
        %929 = vmatpush.xpose.msra.mxu0 0.0
        %930 = vmatpush.xpose.msra.mxu0 0.0
        %931 = vmatpush.xpose.msra.mxu0 0.0
        %932 = vmatpush.xpose.msra.mxu0 0.0
        %933 = vmatpush.xpose.msra.mxu0 0.0
        %934 = vmatpush.xpose.msra.mxu0 0.0
        %935 = vmatpush.xpose.msra.mxu0 0.0
        %936 = vmatpush.xpose.msra.mxu0 0.0
        %937 = vmatpush.xpose.msra.mxu0 %v921
        %938 = vmatpush.xpose.msra.mxu0 %v919
        %939 = vmatmul.f32.gmra.mxu0 %v915
        %v940 = vpop.f32.mrf.mxu0
        %v941 = vadd.f32 0.0, %v940
        %942 = vmatmul.f32.gmra.mxu0 %v917
        %v943 = vpop.f32.mrf.mxu0
        %v944 = vadd.f32 0.0, %v943
        %945 = vdwg.mxu0
        %v946 = vsel %vm605, %v760, 0
        %v948 = vsel %vm605, %v762, 0
        %v950 = vsel %vm605, %v790, 0
        %v952 = vsel %vm605, %v792, 0
        %954 = vmatpush.xpose.msra.mxu0 0.0
        %955 = vmatpush.xpose.msra.mxu0 0.0
        %956 = vmatpush.xpose.msra.mxu0 0.0
        %957 = vmatpush.xpose.msra.mxu0 0.0
        %958 = vmatpush.xpose.msra.mxu0 0.0
        %959 = vmatpush.xpose.msra.mxu0 0.0
        %960 = vmatpush.xpose.msra.mxu0 0.0
        %961 = vmatpush.xpose.msra.mxu0 0.0
        %962 = vmatpush.xpose.msra.mxu0 0.0
        %963 = vmatpush.xpose.msra.mxu0 0.0
        %964 = vmatpush.xpose.msra.mxu0 0.0
        %965 = vmatpush.xpose.msra.mxu0 0.0
        %966 = vmatpush.xpose.msra.mxu0 0.0
        %967 = vmatpush.xpose.msra.mxu0 0.0
        %968 = vmatpush.xpose.msra.mxu0 %v952
        %969 = vmatpush.xpose.msra.mxu0 %v950
        %970 = vmatmul.f32.gmra.mxu0 %v946
        %v971 = vpop.f32.mrf.mxu0
        %v972 = vadd.f32 0.0, %v971
        %973 = vmatmul.f32.gmra.mxu0 %v948
        %v974 = vpop.f32.mrf.mxu0
        %v975 = vadd.f32 0.0, %v974
        %976 = vdwg.mxu0
        %v977 = vsel %vm605, %v764, 0
        %v979 = vsel %vm605, %v766, 0
        %v981 = vsel %vm605, %v794, 0
        %v983 = vsel %vm605, %v796, 0
        %985 = vmatpush.xpose.msra.mxu0 0.0
        %986 = vmatpush.xpose.msra.mxu0 0.0
        %987 = vmatpush.xpose.msra.mxu0 0.0
        %988 = vmatpush.xpose.msra.mxu0 0.0
        %989 = vmatpush.xpose.msra.mxu0 0.0
        %990 = vmatpush.xpose.msra.mxu0 0.0
        %991 = vmatpush.xpose.msra.mxu0 0.0
        %992 = vmatpush.xpose.msra.mxu0 0.0
        %993 = vmatpush.xpose.msra.mxu0 0.0
        %994 = vmatpush.xpose.msra.mxu0 0.0
        %995 = vmatpush.xpose.msra.mxu0 0.0
        %996 = vmatpush.xpose.msra.mxu0 0.0
        %997 = vmatpush.xpose.msra.mxu0 0.0
        %998 = vmatpush.xpose.msra.mxu0 0.0
        %999 = vmatpush.xpose.msra.mxu0 %v983
        %1000 = vmatpush.xpose.msra.mxu0 %v981
        %1001 = vmatmul.f32.gmra.mxu0 %v977
        %v1002 = vpop.f32.mrf.mxu0
        %v1003 = vadd.f32 0.0, %v1002
        %1004 = vmatmul.f32.gmra.mxu0 %v979
        %v1005 = vpop.f32.mrf.mxu0
        %v1006 = vadd.f32 0.0, %v1005
        %1007 = vdwg.mxu0
        %v1008 = vsel %vm605, %v768, 0
        %v1010 = vsel %vm605, %v770, 0
        %v1012 = vsel %vm605, %v798, 0
        %v1014 = vsel %vm605, %v800, 0
        %1016 = vmatpush.xpose.msra.mxu0 0.0
        %1017 = vmatpush.xpose.msra.mxu0 0.0
        %1018 = vmatpush.xpose.msra.mxu0 0.0
        %1019 = vmatpush.xpose.msra.mxu0 0.0
        %1020 = vmatpush.xpose.msra.mxu0 0.0
        %1021 = vmatpush.xpose.msra.mxu0 0.0
        %1022 = vmatpush.xpose.msra.mxu0 0.0
        %1023 = vmatpush.xpose.msra.mxu0 0.0
        %1024 = vmatpush.xpose.msra.mxu0 0.0
        %1025 = vmatpush.xpose.msra.mxu0 0.0
        %1026 = vmatpush.xpose.msra.mxu0 0.0
        %1027 = vmatpush.xpose.msra.mxu0 0.0
        %1028 = vmatpush.xpose.msra.mxu0 0.0
        %1029 = vmatpush.xpose.msra.mxu0 0.0
        %1030 = vmatpush.xpose.msra.mxu0 %v1014
        %1031 = vmatpush.xpose.msra.mxu0 %v1012
        %1032 = vmatmul.f32.gmra.mxu0 %v1008
        %v1033 = vpop.f32.mrf.mxu0
        %v1034 = vadd.f32 0.0, %v1033
        %1035 = vmatmul.f32.gmra.mxu0 %v1010
        %v1036 = vpop.f32.mrf.mxu0
        %v1037 = vadd.f32 0.0, %v1036
        %1038 = vdwg.mxu0
        %v1039 = vsel %vm605, %v772, 0
        %v1041 = vsel %vm605, %v774, 0
        %v1043 = vsel %vm605, %v802, 0
        %v1045 = vsel %vm605, %v804, 0
        %1047 = vmatpush.xpose.msra.mxu0 0.0
        %1048 = vmatpush.xpose.msra.mxu0 0.0
        %1049 = vmatpush.xpose.msra.mxu0 0.0
        %1050 = vmatpush.xpose.msra.mxu0 0.0
        %1051 = vmatpush.xpose.msra.mxu0 0.0
        %1052 = vmatpush.xpose.msra.mxu0 0.0
        %1053 = vmatpush.xpose.msra.mxu0 0.0
        %1054 = vmatpush.xpose.msra.mxu0 0.0
        %1055 = vmatpush.xpose.msra.mxu0 0.0
        %1056 = vmatpush.xpose.msra.mxu0 0.0
        %1057 = vmatpush.xpose.msra.mxu0 0.0
        %1058 = vmatpush.xpose.msra.mxu0 0.0
        %1059 = vmatpush.xpose.msra.mxu0 0.0
        %1060 = vmatpush.xpose.msra.mxu0 0.0
        %1061 = vmatpush.xpose.msra.mxu0 %v1045
        %1062 = vmatpush.xpose.msra.mxu0 %v1043
        %1063 = vmatmul.f32.gmra.mxu0 %v1039
        %v1064 = vpop.f32.mrf.mxu0
        %v1065 = vadd.f32 0.0, %v1064
        %1066 = vmatmul.f32.gmra.mxu0 %v1041
        %v1067 = vpop.f32.mrf.mxu0
        %v1068 = vadd.f32 0.0, %v1067
        %1069 = vdwg.mxu0
        %v1070 = vsel %vm605, %v776, 0
        %v1072 = vsel %vm605, %v778, 0
        %v1074 = vsel %vm605, %v806, 0
        %v1076 = vsel %vm605, %v808, 0
        %1078 = vmatpush.xpose.msra.mxu0 0.0
        %1079 = vmatpush.xpose.msra.mxu0 0.0
        %1080 = vmatpush.xpose.msra.mxu0 0.0
        %1081 = vmatpush.xpose.msra.mxu0 0.0
        %1082 = vmatpush.xpose.msra.mxu0 0.0
        %1083 = vmatpush.xpose.msra.mxu0 0.0
        %1084 = vmatpush.xpose.msra.mxu0 0.0
        %1085 = vmatpush.xpose.msra.mxu0 0.0
        %1086 = vmatpush.xpose.msra.mxu0 0.0
        %1087 = vmatpush.xpose.msra.mxu0 0.0
        %1088 = vmatpush.xpose.msra.mxu0 0.0
        %1089 = vmatpush.xpose.msra.mxu0 0.0
        %1090 = vmatpush.xpose.msra.mxu0 0.0
        %1091 = vmatpush.xpose.msra.mxu0 0.0
        %1092 = vmatpush.xpose.msra.mxu0 %v1076
        %1093 = vmatpush.xpose.msra.mxu0 %v1074
        %1094 = vmatmul.f32.gmra.mxu0 %v1070
        %v1095 = vpop.f32.mrf.mxu0
        %v1096 = vadd.f32 0.0, %v1095
        %1097 = vmatmul.f32.gmra.mxu0 %v1072
        %v1098 = vpop.f32.mrf.mxu0
        %v1099 = vadd.f32 0.0, %v1098
        %1100 = vdwg.mxu0
        %v1101 = vmul.f32 %v879, 0.25
        %v1102 = vmul.f32 %v882, 0.25
        %v1103 = vmul.f32 %v910, 0.25
        %v1104 = vmul.f32 %v913, 0.25
        %v1105 = vmul.f32 %v941, 0.25
        %v1106 = vmul.f32 %v944, 0.25
        %v1107 = vmul.f32 %v972, 0.25
        %v1108 = vmul.f32 %v975, 0.25
        %v1109 = vmul.f32 %v1003, 0.25
        %v1110 = vmul.f32 %v1006, 0.25
        %v1111 = vmul.f32 %v1034, 0.25
        %v1112 = vmul.f32 %v1037, 0.25
        %v1113 = vmul.f32 %v1065, 0.25
        %v1114 = vmul.f32 %v1068, 0.25
        %v1115 = vmul.f32 %v1096, 0.25
        %v1116 = vmul.f32 %v1099, 0.25
        %v1117 = vsel %vm602, 1, 0
        %vm1118 = vcmp.eq.s32.totalorder %v1117, 1
        %v1119 = vsel %vm1118, -1e+09, %v1101
        %v1120 = vsel %vm1118, -1e+09, %v1102
        %v1121 = vsel %vm1118, -1e+09, %v1103
        %v1122 = vsel %vm1118, -1e+09, %v1104
        %v1123 = vsel %vm1118, -1e+09, %v1105
        %v1124 = vsel %vm1118, -1e+09, %v1106
        %v1125 = vsel %vm1118, -1e+09, %v1107
        %v1126 = vsel %vm1118, -1e+09, %v1108
        %v1127 = vsel %vm1118, -1e+09, %v1109
        %v1128 = vsel %vm1118, -1e+09, %v1110
        %v1129 = vsel %vm1118, -1e+09, %v1111
        %v1130 = vsel %vm1118, -1e+09, %v1112
        %v1131 = vsel %vm1118, -1e+09, %v1113
        %v1132 = vsel %vm1118, -1e+09, %v1114
        %v1133 = vsel %vm1118, -1e+09, %v1115
        %v1134 = vsel %vm1118, -1e+09, %v1116
        %v1135 = vsel %vm605, %v1119, -inf
        %1136 = vmax.xlane.f32.xlu0 %v1135
        %v1137 = vpop.xlane.xlu0 %1136
        %v1138 = vsel %vm605, %v1120, -inf
        %1139 = vmax.xlane.f32.xlu0 %v1138
        %v1140 = vpop.xlane.xlu0 %1139
        %v1141 = vsel %vm605, %v1121, -inf
        %1142 = vmax.xlane.f32.xlu0 %v1141
        %v1143 = vpop.xlane.xlu0 %1142
        %v1144 = vsel %vm605, %v1122, -inf
        %1145 = vmax.xlane.f32.xlu0 %v1144
        %v1146 = vpop.xlane.xlu0 %1145
        %v1147 = vsel %vm605, %v1123, -inf
        %1148 = vmax.xlane.f32.xlu0 %v1147
        %v1149 = vpop.xlane.xlu0 %1148
        %v1150 = vsel %vm605, %v1124, -inf
        %1151 = vmax.xlane.f32.xlu0 %v1150
        %v1152 = vpop.xlane.xlu0 %1151
        %v1153 = vsel %vm605, %v1125, -inf
        %1154 = vmax.xlane.f32.xlu0 %v1153
        %v1155 = vpop.xlane.xlu0 %1154
        %v1156 = vsel %vm605, %v1126, -inf
        %1157 = vmax.xlane.f32.xlu0 %v1156
        %v1158 = vpop.xlane.xlu0 %1157
        %v1159 = vsel %vm605, %v1127, -inf
        %1160 = vmax.xlane.f32.xlu0 %v1159
        %v1161 = vpop.xlane.xlu0 %1160
        %v1162 = vsel %vm605, %v1128, -inf
        %1163 = vmax.xlane.f32.xlu0 %v1162
        %v1164 = vpop.xlane.xlu0 %1163
        %v1165 = vsel %vm605, %v1129, -inf
        %1166 = vmax.xlane.f32.xlu0 %v1165
        %v1167 = vpop.xlane.xlu0 %1166
        %v1168 = vsel %vm605, %v1130, -inf
        %1169 = vmax.xlane.f32.xlu0 %v1168
        %v1170 = vpop.xlane.xlu0 %1169
        %v1171 = vsel %vm605, %v1131, -inf
        %1172 = vmax.xlane.f32.xlu0 %v1171
        %v1173 = vpop.xlane.xlu0 %1172
        %v1174 = vsel %vm605, %v1132, -inf
        %1175 = vmax.xlane.f32.xlu0 %v1174
        %v1176 = vpop.xlane.xlu0 %1175
        %v1177 = vsel %vm605, %v1133, -inf
        %1178 = vmax.xlane.f32.xlu0 %v1177
        %v1179 = vpop.xlane.xlu0 %1178
        %v1180 = vsel %vm605, %v1134, -inf
        %1181 = vmax.xlane.f32.xlu0 %v1180
        %v1182 = vpop.xlane.xlu0 %1181
        %v1183 = vsub.f32 %v1119, %v1137
        %v1184 = vsub.f32 %v1120, %v1140
        %v1185 = vsub.f32 %v1121, %v1143
        %v1186 = vsub.f32 %v1122, %v1146
        %v1187 = vsub.f32 %v1123, %v1149
        %v1188 = vsub.f32 %v1124, %v1152
        %v1189 = vsub.f32 %v1125, %v1155
        %v1190 = vsub.f32 %v1126, %v1158
        %v1191 = vsub.f32 %v1127, %v1161
        %v1192 = vsub.f32 %v1128, %v1164
        %v1193 = vsub.f32 %v1129, %v1167
        %v1194 = vsub.f32 %v1130, %v1170
        %v1195 = vsub.f32 %v1131, %v1173
        %v1196 = vsub.f32 %v1132, %v1176
        %v1197 = vsub.f32 %v1133, %v1179
        %v1198 = vsub.f32 %v1134, %v1182
        %v1199 = vmul.f32 %v1183, 1.442695
        %v1200 = vpow.pop %v1199
        %v1201 = vmul.f32 %v1184, 1.442695
        %v1202 = vpow.pop %v1201
        %v1203 = vmul.f32 %v1185, 1.442695
        %v1204 = vpow.pop %v1203
        %v1205 = vmul.f32 %v1186, 1.442695
        %v1206 = vpow.pop %v1205
        %v1207 = vmul.f32 %v1187, 1.442695
        %v1208 = vpow.pop %v1207
        %v1209 = vmul.f32 %v1188, 1.442695
        %v1210 = vpow.pop %v1209
        %v1211 = vmul.f32 %v1189, 1.442695
        %v1212 = vpow.pop %v1211
        %v1213 = vmul.f32 %v1190, 1.442695
        %v1214 = vpow.pop %v1213
        %v1215 = vmul.f32 %v1191, 1.442695
        %v1216 = vpow.pop %v1215
        %v1217 = vmul.f32 %v1192, 1.442695
        %v1218 = vpow.pop %v1217
        %v1219 = vmul.f32 %v1193, 1.442695
        %v1220 = vpow.pop %v1219
        %v1221 = vmul.f32 %v1194, 1.442695
        %v1222 = vpow.pop %v1221
        %v1223 = vmul.f32 %v1195, 1.442695
        %v1224 = vpow.pop %v1223
        %v1225 = vmul.f32 %v1196, 1.442695
        %v1226 = vpow.pop %v1225
        %v1227 = vmul.f32 %v1197, 1.442695
        %v1228 = vpow.pop %v1227
        %v1229 = vmul.f32 %v1198, 1.442695
        %v1230 = vpow.pop %v1229
        %v1231 = vsel %vm605, %v1200, 0.0
        %1232 = vadd.xlane.f32.xlu0 %v1231
        %v1233 = vpop.xlane.xlu0 %1232
        %v1234 = vsel %vm605, %v1202, 0.0
        %1235 = vadd.xlane.f32.xlu0 %v1234
        %v1236 = vpop.xlane.xlu0 %1235
        %v1237 = vsel %vm605, %v1204, 0.0
        %1238 = vadd.xlane.f32.xlu0 %v1237
        %v1239 = vpop.xlane.xlu0 %1238
        %v1240 = vsel %vm605, %v1206, 0.0
        %1241 = vadd.xlane.f32.xlu0 %v1240
        %v1242 = vpop.xlane.xlu0 %1241
        %v1243 = vsel %vm605, %v1208, 0.0
        %1244 = vadd.xlane.f32.xlu0 %v1243
        %v1245 = vpop.xlane.xlu0 %1244
        %v1246 = vsel %vm605, %v1210, 0.0
        %1247 = vadd.xlane.f32.xlu0 %v1246
        %v1248 = vpop.xlane.xlu0 %1247
        %v1249 = vsel %vm605, %v1212, 0.0
        %1250 = vadd.xlane.f32.xlu0 %v1249
        %v1251 = vpop.xlane.xlu0 %1250
        %v1252 = vsel %vm605, %v1214, 0.0
        %1253 = vadd.xlane.f32.xlu0 %v1252
        %v1254 = vpop.xlane.xlu0 %1253
        %v1255 = vsel %vm605, %v1216, 0.0
        %1256 = vadd.xlane.f32.xlu0 %v1255
        %v1257 = vpop.xlane.xlu0 %1256
        %v1258 = vsel %vm605, %v1218, 0.0
        %1259 = vadd.xlane.f32.xlu0 %v1258
        %v1260 = vpop.xlane.xlu0 %1259
        %v1261 = vsel %vm605, %v1220, 0.0
        %1262 = vadd.xlane.f32.xlu0 %v1261
        %v1263 = vpop.xlane.xlu0 %1262
        %v1264 = vsel %vm605, %v1222, 0.0
        %1265 = vadd.xlane.f32.xlu0 %v1264
        %v1266 = vpop.xlane.xlu0 %1265
        %v1267 = vsel %vm605, %v1224, 0.0
        %1268 = vadd.xlane.f32.xlu0 %v1267
        %v1269 = vpop.xlane.xlu0 %1268
        %v1270 = vsel %vm605, %v1226, 0.0
        %1271 = vadd.xlane.f32.xlu0 %v1270
        %v1272 = vpop.xlane.xlu0 %1271
        %v1273 = vsel %vm605, %v1228, 0.0
        %1274 = vadd.xlane.f32.xlu0 %v1273
        %v1275 = vpop.xlane.xlu0 %1274
        %v1276 = vsel %vm605, %v1230, 0.0
        %1277 = vadd.xlane.f32.xlu0 %v1276
        %v1278 = vpop.xlane.xlu0 %1277
        %v1279 = vrcp.pop %v1233
        %v1280 = vrcp.pop %v1236
        %v1281 = vrcp.pop %v1239
        %v1282 = vrcp.pop %v1242
        %v1283 = vrcp.pop %v1245
        %v1284 = vrcp.pop %v1248
        %v1285 = vrcp.pop %v1251
        %v1286 = vrcp.pop %v1254
        %v1287 = vrcp.pop %v1257
        %v1288 = vrcp.pop %v1260
        %v1289 = vrcp.pop %v1263
        %v1290 = vrcp.pop %v1266
        %v1291 = vrcp.pop %v1269
        %v1292 = vrcp.pop %v1272
        %v1293 = vrcp.pop %v1275
        %v1294 = vrcp.pop %v1278
        %v1295 = vmul.f32 %v1200, %v1279
        %v1296 = vmul.f32 %v1202, %v1280
        %v1297 = vmul.f32 %v1204, %v1281
        %v1298 = vmul.f32 %v1206, %v1282
        %v1299 = vmul.f32 %v1208, %v1283
        %v1300 = vmul.f32 %v1210, %v1284
        %v1301 = vmul.f32 %v1212, %v1285
        %v1302 = vmul.f32 %v1214, %v1286
        %v1303 = vmul.f32 %v1216, %v1287
        %v1304 = vmul.f32 %v1218, %v1288
        %v1305 = vmul.f32 %v1220, %v1289
        %v1306 = vmul.f32 %v1222, %v1290
        %v1307 = vmul.f32 %v1224, %v1291
        %v1308 = vmul.f32 %v1226, %v1292
        %v1309 = vmul.f32 %v1228, %v1293
        %v1310 = vmul.f32 %v1230, %v1294
        %v1311 = vmul.f32 %v1295, %v630
        %v1312 = vmul.f32 %v1296, %v631
        %v1313 = vmul.f32 %v1297, %v630
        %v1314 = vmul.f32 %v1298, %v631
        %v1315 = vmul.f32 %v1299, %v630
        %v1316 = vmul.f32 %v1300, %v631
        %v1317 = vmul.f32 %v1301, %v630
        %v1318 = vmul.f32 %v1302, %v631
        %v1319 = vmul.f32 %v1303, %v630
        %v1320 = vmul.f32 %v1304, %v631
        %v1321 = vmul.f32 %v1305, %v630
        %v1322 = vmul.f32 %v1306, %v631
        %v1323 = vmul.f32 %v1307, %v630
        %v1324 = vmul.f32 %v1308, %v631
        %v1325 = vmul.f32 %v1309, %v630
        %v1326 = vmul.f32 %v1310, %v631
        %1327 = vst.msk [vmem:[%s550] sm:$0xff] %vm605, %v1311
        %1328 = vst.msk [vmem:[%s550 + $0x8] sm:$0xff] %vm605, %v1312
        %1329 = vst.msk [vmem:[%s550 + $0x10] sm:$0xff] %vm605, %v1313
        %1330 = vst.msk [vmem:[%s550 + $0x18] sm:$0xff] %vm605, %v1314
        %1331 = vst.msk [vmem:[%s550 + $0x20] sm:$0xff] %vm605, %v1315
        %1332 = vst.msk [vmem:[%s550 + $0x28] sm:$0xff] %vm605, %v1316
        %1333 = vst.msk [vmem:[%s550 + $0x30] sm:$0xff] %vm605, %v1317
        %1334 = vst.msk [vmem:[%s550 + $0x38] sm:$0xff] %vm605, %v1318
        %1335 = vst.msk [vmem:[%s550 + $0x40] sm:$0xff] %vm605, %v1319
        %1336 = vst.msk [vmem:[%s550 + $0x48] sm:$0xff] %vm605, %v1320
        %1337 = vst.msk [vmem:[%s550 + $0x50] sm:$0xff] %vm605, %v1321
        %1338 = vst.msk [vmem:[%s550 + $0x58] sm:$0xff] %vm605, %v1322
        %1339 = vst.msk [vmem:[%s550 + $0x60] sm:$0xff] %vm605, %v1323
        %1340 = vst.msk [vmem:[%s550 + $0x68] sm:$0xff] %vm605, %v1324
        %1341 = vst.msk [vmem:[%s550 + $0x70] sm:$0xff] %vm605, %v1325
        %1342 = vst.msk [vmem:[%s550 + $0x78] sm:$0xff] %vm605, %v1326
        %v1344 = vsel %vm605, %v1311, 0
        %v1347 = vsel %vm605, %v1312, 0
        %1349 = vmatpush.msra.mxu0 0.0
        %1350 = vmatpush.msra.mxu0 0.0
        %1351 = vmatpush.msra.mxu0 0.0
        %1352 = vmatpush.msra.mxu0 0.0
        %1353 = vmatpush.msra.mxu0 0.0
        %1354 = vmatpush.msra.mxu0 0.0
        %1355 = vmatpush.msra.mxu0 0.0
        %1356 = vmatpush.msra.mxu0 0.0
        %1357 = vmatpush.msra.mxu0 0.0
        %1358 = vmatpush.msra.mxu0 0.0
        %1359 = vmatpush.msra.mxu0 0.0
        %1360 = vmatpush.msra.mxu0 0.0
        %1361 = vmatpush.msra.mxu0 0.0
        %1362 = vmatpush.msra.mxu0 0.0
        %1363 = vmatpush.msra.mxu0 %v747
        %1364 = vmatpush.msra.mxu0 %v744
        %1365 = vmatmul.f32.gmra.mxu0 %v1344
        %v1366 = vpop.f32.mrf.mxu0
        %v1367 = vadd.f32 0.0, %v1366
        %1368 = vmatmul.f32.gmra.mxu0 %v1347
        %v1369 = vpop.f32.mrf.mxu0
        %v1370 = vadd.f32 0.0, %v1369
        %1371 = vdwg.mxu0
        %v1373 = vsel %vm605, %v1313, 0
        %v1376 = vsel %vm605, %v1314, 0
        %1378 = vmatpush.msra.mxu0 0.0
        %1379 = vmatpush.msra.mxu0 0.0
        %1380 = vmatpush.msra.mxu0 0.0
        %1381 = vmatpush.msra.mxu0 0.0
        %1382 = vmatpush.msra.mxu0 0.0
        %1383 = vmatpush.msra.mxu0 0.0
        %1384 = vmatpush.msra.mxu0 0.0
        %1385 = vmatpush.msra.mxu0 0.0
        %1386 = vmatpush.msra.mxu0 0.0
        %1387 = vmatpush.msra.mxu0 0.0
        %1388 = vmatpush.msra.mxu0 0.0
        %1389 = vmatpush.msra.mxu0 0.0
        %1390 = vmatpush.msra.mxu0 0.0
        %1391 = vmatpush.msra.mxu0 0.0
        %1392 = vmatpush.msra.mxu0 %v814
        %1393 = vmatpush.msra.mxu0 %v812
        %1394 = vmatmul.f32.gmra.mxu0 %v1373
        %v1395 = vpop.f32.mrf.mxu0
        %v1396 = vadd.f32 0.0, %v1395
        %1397 = vmatmul.f32.gmra.mxu0 %v1376
        %v1398 = vpop.f32.mrf.mxu0
        %v1399 = vadd.f32 0.0, %v1398
        %1400 = vdwg.mxu0
        %v1402 = vsel %vm605, %v1315, 0
        %v1405 = vsel %vm605, %v1316, 0
        %1407 = vmatpush.msra.mxu0 0.0
        %1408 = vmatpush.msra.mxu0 0.0
        %1409 = vmatpush.msra.mxu0 0.0
        %1410 = vmatpush.msra.mxu0 0.0
        %1411 = vmatpush.msra.mxu0 0.0
        %1412 = vmatpush.msra.mxu0 0.0
        %1413 = vmatpush.msra.mxu0 0.0
        %1414 = vmatpush.msra.mxu0 0.0
        %1415 = vmatpush.msra.mxu0 0.0
        %1416 = vmatpush.msra.mxu0 0.0
        %1417 = vmatpush.msra.mxu0 0.0
        %1418 = vmatpush.msra.mxu0 0.0
        %1419 = vmatpush.msra.mxu0 0.0
        %1420 = vmatpush.msra.mxu0 0.0
        %1421 = vmatpush.msra.mxu0 %v820
        %1422 = vmatpush.msra.mxu0 %v818
        %1423 = vmatmul.f32.gmra.mxu0 %v1402
        %v1424 = vpop.f32.mrf.mxu0
        %v1425 = vadd.f32 0.0, %v1424
        %1426 = vmatmul.f32.gmra.mxu0 %v1405
        %v1427 = vpop.f32.mrf.mxu0
        %v1428 = vadd.f32 0.0, %v1427
        %1429 = vdwg.mxu0
        %v1431 = vsel %vm605, %v1317, 0
        %v1434 = vsel %vm605, %v1318, 0
        %1436 = vmatpush.msra.mxu0 0.0
        %1437 = vmatpush.msra.mxu0 0.0
        %1438 = vmatpush.msra.mxu0 0.0
        %1439 = vmatpush.msra.mxu0 0.0
        %1440 = vmatpush.msra.mxu0 0.0
        %1441 = vmatpush.msra.mxu0 0.0
        %1442 = vmatpush.msra.mxu0 0.0
        %1443 = vmatpush.msra.mxu0 0.0
        %1444 = vmatpush.msra.mxu0 0.0
        %1445 = vmatpush.msra.mxu0 0.0
        %1446 = vmatpush.msra.mxu0 0.0
        %1447 = vmatpush.msra.mxu0 0.0
        %1448 = vmatpush.msra.mxu0 0.0
        %1449 = vmatpush.msra.mxu0 0.0
        %1450 = vmatpush.msra.mxu0 %v826
        %1451 = vmatpush.msra.mxu0 %v824
        %1452 = vmatmul.f32.gmra.mxu0 %v1431
        %v1453 = vpop.f32.mrf.mxu0
        %v1454 = vadd.f32 0.0, %v1453
        %1455 = vmatmul.f32.gmra.mxu0 %v1434
        %v1456 = vpop.f32.mrf.mxu0
        %v1457 = vadd.f32 0.0, %v1456
        %1458 = vdwg.mxu0
        %v1460 = vsel %vm605, %v1319, 0
        %v1463 = vsel %vm605, %v1320, 0
        %1465 = vmatpush.msra.mxu0 0.0
        %1466 = vmatpush.msra.mxu0 0.0
        %1467 = vmatpush.msra.mxu0 0.0
        %1468 = vmatpush.msra.mxu0 0.0
        %1469 = vmatpush.msra.mxu0 0.0
        %1470 = vmatpush.msra.mxu0 0.0
        %1471 = vmatpush.msra.mxu0 0.0
        %1472 = vmatpush.msra.mxu0 0.0
        %1473 = vmatpush.msra.mxu0 0.0
        %1474 = vmatpush.msra.mxu0 0.0
        %1475 = vmatpush.msra.mxu0 0.0
        %1476 = vmatpush.msra.mxu0 0.0
        %1477 = vmatpush.msra.mxu0 0.0
        %1478 = vmatpush.msra.mxu0 0.0
        %1479 = vmatpush.msra.mxu0 %v832
        %1480 = vmatpush.msra.mxu0 %v830
        %1481 = vmatmul.f32.gmra.mxu0 %v1460
        %v1482 = vpop.f32.mrf.mxu0
        %v1483 = vadd.f32 0.0, %v1482
        %1484 = vmatmul.f32.gmra.mxu0 %v1463
        %v1485 = vpop.f32.mrf.mxu0
        %v1486 = vadd.f32 0.0, %v1485
        %1487 = vdwg.mxu0
        %v1489 = vsel %vm605, %v1321, 0
        %v1492 = vsel %vm605, %v1322, 0
        %1494 = vmatpush.msra.mxu0 0.0
        %1495 = vmatpush.msra.mxu0 0.0
        %1496 = vmatpush.msra.mxu0 0.0
        %1497 = vmatpush.msra.mxu0 0.0
        %1498 = vmatpush.msra.mxu0 0.0
        %1499 = vmatpush.msra.mxu0 0.0
        %1500 = vmatpush.msra.mxu0 0.0
        %1501 = vmatpush.msra.mxu0 0.0
        %1502 = vmatpush.msra.mxu0 0.0
        %1503 = vmatpush.msra.mxu0 0.0
        %1504 = vmatpush.msra.mxu0 0.0
        %1505 = vmatpush.msra.mxu0 0.0
        %1506 = vmatpush.msra.mxu0 0.0
        %1507 = vmatpush.msra.mxu0 0.0
        %1508 = vmatpush.msra.mxu0 %v838
        %1509 = vmatpush.msra.mxu0 %v836
        %1510 = vmatmul.f32.gmra.mxu0 %v1489
        %v1511 = vpop.f32.mrf.mxu0
        %v1512 = vadd.f32 0.0, %v1511
        %1513 = vmatmul.f32.gmra.mxu0 %v1492
        %v1514 = vpop.f32.mrf.mxu0
        %v1515 = vadd.f32 0.0, %v1514
        %1516 = vdwg.mxu0
        %v1518 = vsel %vm605, %v1323, 0
        %v1521 = vsel %vm605, %v1324, 0
        %1523 = vmatpush.msra.mxu0 0.0
        %1524 = vmatpush.msra.mxu0 0.0
        %1525 = vmatpush.msra.mxu0 0.0
        %1526 = vmatpush.msra.mxu0 0.0
        %1527 = vmatpush.msra.mxu0 0.0
        %1528 = vmatpush.msra.mxu0 0.0
        %1529 = vmatpush.msra.mxu0 0.0
        %1530 = vmatpush.msra.mxu0 0.0
        %1531 = vmatpush.msra.mxu0 0.0
        %1532 = vmatpush.msra.mxu0 0.0
        %1533 = vmatpush.msra.mxu0 0.0
        %1534 = vmatpush.msra.mxu0 0.0
        %1535 = vmatpush.msra.mxu0 0.0
        %1536 = vmatpush.msra.mxu0 0.0
        %1537 = vmatpush.msra.mxu0 %v844
        %1538 = vmatpush.msra.mxu0 %v842
        %1539 = vmatmul.f32.gmra.mxu0 %v1518
        %v1540 = vpop.f32.mrf.mxu0
        %v1541 = vadd.f32 0.0, %v1540
        %1542 = vmatmul.f32.gmra.mxu0 %v1521
        %v1543 = vpop.f32.mrf.mxu0
        %v1544 = vadd.f32 0.0, %v1543
        %1545 = vdwg.mxu0
        %v1547 = vsel %vm605, %v1325, 0
        %v1550 = vsel %vm605, %v1326, 0
        %1552 = vmatpush.msra.mxu0 0.0
        %1553 = vmatpush.msra.mxu0 0.0
        %1554 = vmatpush.msra.mxu0 0.0
        %1555 = vmatpush.msra.mxu0 0.0
        %1556 = vmatpush.msra.mxu0 0.0
        %1557 = vmatpush.msra.mxu0 0.0
        %1558 = vmatpush.msra.mxu0 0.0
        %1559 = vmatpush.msra.mxu0 0.0
        %1560 = vmatpush.msra.mxu0 0.0
        %1561 = vmatpush.msra.mxu0 0.0
        %1562 = vmatpush.msra.mxu0 0.0
        %1563 = vmatpush.msra.mxu0 0.0
        %1564 = vmatpush.msra.mxu0 0.0
        %1565 = vmatpush.msra.mxu0 0.0
        %1566 = vmatpush.msra.mxu0 %v850
        %1567 = vmatpush.msra.mxu0 %v848
        %1568 = vmatmul.f32.gmra.mxu0 %v1547
        %v1569 = vpop.f32.mrf.mxu0
        %v1570 = vadd.f32 0.0, %v1569
        %1571 = vmatmul.f32.gmra.mxu0 %v1550
        %v1572 = vpop.f32.mrf.mxu0
        %v1573 = vadd.f32 0.0, %v1572
        %1574 = vdwg.mxu0
        %1577 = vrot.lane.b32.xlu0 %v1396, 16
        %v1578 = vpop.permute.xlu0 %1577
        %1579 = vrot.lane.b32.xlu0 %v1399, 16
        %v1580 = vpop.permute.xlu0 %1579
        %1585 = vrot.lane.b32.xlu0 %v1425, 32
        %v1586 = vpop.permute.xlu0 %1585
        %1587 = vrot.lane.b32.xlu0 %v1428, 32
        %v1588 = vpop.permute.xlu0 %1587
        %1593 = vrot.lane.b32.xlu0 %v1454, 48
        %v1594 = vpop.permute.xlu0 %1593
        %1595 = vrot.lane.b32.xlu0 %v1457, 48
        %v1596 = vpop.permute.xlu0 %1595
        %1601 = vrot.lane.b32.xlu0 %v1483, 64
        %v1602 = vpop.permute.xlu0 %1601
        %1603 = vrot.lane.b32.xlu0 %v1486, 64
        %v1604 = vpop.permute.xlu0 %1603
        %1609 = vrot.lane.b32.xlu0 %v1512, 80
        %v1610 = vpop.permute.xlu0 %1609
        %1611 = vrot.lane.b32.xlu0 %v1515, 80
        %v1612 = vpop.permute.xlu0 %1611
        %1617 = vrot.lane.b32.xlu0 %v1541, 96
        %v1618 = vpop.permute.xlu0 %1617
        %1619 = vrot.lane.b32.xlu0 %v1544, 96
        %v1620 = vpop.permute.xlu0 %1619
        %1625 = vrot.lane.b32.xlu0 %v1570, 112
        %v1626 = vpop.permute.xlu0 %1625
        %1627 = vrot.lane.b32.xlu0 %v1573, 112
        %v1628 = vpop.permute.xlu0 %1627
        %v1631 = vsel %vm605, %v1367, %v1578
        %v1632 = vsel %vm605, %v1370, %v1580
        %vm1633 = vcmask 261120
        %v1634 = vsel %vm1633, %v1631, %v1586
        %v1635 = vsel %vm1633, %v1632, %v1588
        %vm1636 = vcmask 392192
        %v1637 = vsel %vm1636, %v1634, %v1594
        %v1638 = vsel %vm1636, %v1635, %v1596
        %vm1639 = vcmask 523264
        %v1640 = vsel %vm1639, %v1637, %v1602
        %v1641 = vsel %vm1639, %v1638, %v1604
        %vm1642 = vcmask 654336
        %v1643 = vsel %vm1642, %v1640, %v1610
        %v1644 = vsel %vm1642, %v1641, %v1612
        %vm1645 = vcmask 785408
        %v1646 = vsel %vm1645, %v1643, %v1618
        %v1647 = vsel %vm1645, %v1644, %v1620
        %vm1648 = vcmask 916480
        %v1649 = vsel %vm1648, %v1646, %v1626
        %v1650 = vsel %vm1648, %v1647, %v1628
        %v1651 = vld [vmem:[#allocation9] sm:$0xff]
        %v1652 = vld [vmem:[#allocation9 + $0x8] sm:$0xff]
        %v1653 = vld [vmem:[#allocation9 + $0x10] sm:$0xff]
        %v1654 = vld [vmem:[#allocation9 + $0x18] sm:$0xff]
        %v1655 = vld [vmem:[#allocation9 + $0x20] sm:$0xff]
        %v1656 = vld [vmem:[#allocation9 + $0x28] sm:$0xff]
        %v1657 = vld [vmem:[#allocation9 + $0x30] sm:$0xff]
        %v1658 = vld [vmem:[#allocation9 + $0x38] sm:$0xff]
        %v1659 = vld [vmem:[#allocation9 + $0x40] sm:$0xff]
        %v1660 = vld [vmem:[#allocation9 + $0x48] sm:$0xff]
        %v1661 = vld [vmem:[#allocation9 + $0x50] sm:$0xff]
        %v1662 = vld [vmem:[#allocation9 + $0x58] sm:$0xff]
        %v1663 = vld [vmem:[#allocation9 + $0x60] sm:$0xff]
        %v1664 = vld [vmem:[#allocation9 + $0x68] sm:$0xff]
        %v1665 = vld [vmem:[#allocation9 + $0x70] sm:$0xff]
        %v1666 = vld [vmem:[#allocation9 + $0x78] sm:$0xff]
        %1667 = vmatpush.msra.mxu0 %v1666
        %1668 = vmatpush.msra.mxu0 %v1665
        %1669 = vmatpush.msra.mxu0 %v1664
        %1670 = vmatpush.msra.mxu0 %v1663
        %1671 = vmatpush.msra.mxu0 %v1662
        %1672 = vmatpush.msra.mxu0 %v1661
        %1673 = vmatpush.msra.mxu0 %v1660
        %1674 = vmatpush.msra.mxu0 %v1659
        %1675 = vmatpush.msra.mxu0 %v1658
        %1676 = vmatpush.msra.mxu0 %v1657
        %1677 = vmatpush.msra.mxu0 %v1656
        %1678 = vmatpush.msra.mxu0 %v1655
        %1679 = vmatpush.msra.mxu0 %v1654
        %1680 = vmatpush.msra.mxu0 %v1653
        %1681 = vmatpush.msra.mxu0 %v1652
        %1682 = vmatpush.msra.mxu0 %v1651
        %1683 = vmatmul.f32.gmra.mxu0 %v1649
        %v1684 = vpop.f32.mrf.mxu0
        %v1685 = vadd.f32 %v594, %v1684
        %1686 = vmatmul.f32.gmra.mxu0 %v1650
        %v1687 = vpop.f32.mrf.mxu0
        %v1688 = vadd.f32 %v597, %v1687
        %1689 = vdwg.mxu0
        %v1690 = vld [vmem:[%s7] sm:$0x1]
        %v1691 = vld [vmem:[%s8] sm:$0x1]
        %1692 = vadd.xlane.f32.xlu0 %v1685
        %v1693 = vpop.xlane.xlu0 %1692
        %1694 = vadd.xlane.f32.xlu0 %v1688
        %v1695 = vpop.xlane.xlu0 %1694
        %v1696 = vrcp.pop 128.0
        %v1697 = vmul.f32 128.0, %v1696
        %v1698 = vsub.f32 1.0, %v1697
        %v1699 = vmul.f32 %v1696, %v1698
        %v1700 = vadd.f32 %v1696, %v1699
        %vm1701 = vweird.f32 %v1696
        %v1702 = vsel %vm1701, %v1696, %v1700
        %v1703 = vmul.f32 %v1693, %v1702
        %v1704 = vmul.f32 %v1695, %v1702
        %v1705 = vsub.f32 %v1685, %v1703
        %v1706 = vsub.f32 %v1688, %v1704
        %v1707 = vmul.f32 %v1705, %v1705
        %v1708 = vmul.f32 %v1706, %v1706
        %1709 = vadd.xlane.f32.xlu0 %v1707
        %v1710 = vpop.xlane.xlu0 %1709
        %1711 = vadd.xlane.f32.xlu0 %v1708
        %v1712 = vpop.xlane.xlu0 %1711
        %v1713 = vmul.f32 %v1710, %v1702
        %v1714 = vmul.f32 %v1712, %v1702
        %v1715 = vadd.f32 %v1713, 1e-05
        %v1716 = vadd.f32 %v1714, 1e-05
        %v1717 = vrsqrt.pop %v1715
        %v1718 = vmul.f32 %v1717, %v1715
        %v1719 = vmul.f32 %v1718, %v1717
        %v1720 = vmul.f32 0.5, %v1719
        %v1721 = vsub.f32 1.5, %v1720
        %v1722 = vmul.f32 %v1717, %v1721
        %vm1723 = vweird.f32 %v1715
        %vm1724 = vweird.f32 %v1717
        %vm1725 = vmor %vm1723, %vm1724
        %v1726 = vsel %vm1725, %v1717, %v1722
        %v1727 = vrsqrt.pop %v1716
        %v1728 = vmul.f32 %v1727, %v1716
        %v1729 = vmul.f32 %v1728, %v1727
        %v1730 = vmul.f32 0.5, %v1729
        %v1731 = vsub.f32 1.5, %v1730
        %v1732 = vmul.f32 %v1727, %v1731
        %vm1733 = vweird.f32 %v1716
        %vm1734 = vweird.f32 %v1727
        %vm1735 = vmor %vm1733, %vm1734
        %v1736 = vsel %vm1735, %v1727, %v1732
        %v1737 = vmul.f32 %v1705, %v1726
        %v1738 = vmul.f32 %v1706, %v1736
        %v1740 = vperm.slane %v1690, 0
        %v1742 = vmul.f32 %v1737, %v1740
        %v1743 = vmul.f32 %v1738, %v1740
        %v1745 = vperm.slane %v1691, 0
        %v1747 = vadd.f32 %v1742, %v1745
        %v1748 = vadd.f32 %v1743, %v1745
        %v1749 = vld [vmem:[#allocation10] sm:$0xff]
        %v1750 = vld [vmem:[#allocation10 + $0x8] sm:$0xff]
        %v1751 = vld [vmem:[#allocation10 + $0x10] sm:$0xff]
        %v1752 = vld [vmem:[#allocation10 + $0x18] sm:$0xff]
        %v1753 = vld [vmem:[#allocation10 + $0x20] sm:$0xff]
        %v1754 = vld [vmem:[#allocation10 + $0x28] sm:$0xff]
        %v1755 = vld [vmem:[#allocation10 + $0x30] sm:$0xff]
        %v1756 = vld [vmem:[#allocation10 + $0x38] sm:$0xff]
        %v1757 = vld [vmem:[#allocation10 + $0x40] sm:$0xff]
        %v1758 = vld [vmem:[#allocation10 + $0x48] sm:$0xff]
        %v1759 = vld [vmem:[#allocation10 + $0x50] sm:$0xff]
        %v1760 = vld [vmem:[#allocation10 + $0x58] sm:$0xff]
        %v1761 = vld [vmem:[#allocation10 + $0x60] sm:$0xff]
        %v1762 = vld [vmem:[#allocation10 + $0x68] sm:$0xff]
        %v1763 = vld [vmem:[#allocation10 + $0x70] sm:$0xff]
        %v1764 = vld [vmem:[#allocation10 + $0x78] sm:$0xff]
        %v1765 = vld [vmem:[#allocation10 + $0x80] sm:$0xff]
        %v1766 = vld [vmem:[#allocation10 + $0x88] sm:$0xff]
        %v1767 = vld [vmem:[#allocation10 + $0x90] sm:$0xff]
        %v1768 = vld [vmem:[#allocation10 + $0x98] sm:$0xff]
        %v1769 = vld [vmem:[#allocation10 + $0xa0] sm:$0xff]
        %v1770 = vld [vmem:[#allocation10 + $0xa8] sm:$0xff]
        %v1771 = vld [vmem:[#allocation10 + $0xb0] sm:$0xff]
        %v1772 = vld [vmem:[#allocation10 + $0xb8] sm:$0xff]
        %v1773 = vld [vmem:[#allocation10 + $0xc0] sm:$0xff]
        %v1774 = vld [vmem:[#allocation10 + $0xc8] sm:$0xff]
        %v1775 = vld [vmem:[#allocation10 + $0xd0] sm:$0xff]
        %v1776 = vld [vmem:[#allocation10 + $0xd8] sm:$0xff]
        %v1777 = vld [vmem:[#allocation10 + $0xe0] sm:$0xff]
        %v1778 = vld [vmem:[#allocation10 + $0xe8] sm:$0xff]
        %v1779 = vld [vmem:[#allocation10 + $0xf0] sm:$0xff]
        %v1780 = vld [vmem:[#allocation10 + $0xf8] sm:$0xff]
        %v1781 = vld [vmem:[#allocation10 + $0x100] sm:$0xff]
        %v1782 = vld [vmem:[#allocation10 + $0x108] sm:$0xff]
        %v1783 = vld [vmem:[#allocation10 + $0x110] sm:$0xff]
        %v1784 = vld [vmem:[#allocation10 + $0x118] sm:$0xff]
        %v1785 = vld [vmem:[#allocation10 + $0x120] sm:$0xff]
        %v1786 = vld [vmem:[#allocation10 + $0x128] sm:$0xff]
        %v1787 = vld [vmem:[#allocation10 + $0x130] sm:$0xff]
        %v1788 = vld [vmem:[#allocation10 + $0x138] sm:$0xff]
        %v1789 = vld [vmem:[#allocation10 + $0x140] sm:$0xff]
        %v1790 = vld [vmem:[#allocation10 + $0x148] sm:$0xff]
        %v1791 = vld [vmem:[#allocation10 + $0x150] sm:$0xff]
        %v1792 = vld [vmem:[#allocation10 + $0x158] sm:$0xff]
        %v1793 = vld [vmem:[#allocation10 + $0x160] sm:$0xff]
        %v1794 = vld [vmem:[#allocation10 + $0x168] sm:$0xff]
        %v1795 = vld [vmem:[#allocation10 + $0x170] sm:$0xff]
        %v1796 = vld [vmem:[#allocation10 + $0x178] sm:$0xff]
        %v1797 = vld [vmem:[#allocation10 + $0x180] sm:$0xff]
        %v1798 = vld [vmem:[#allocation10 + $0x188] sm:$0xff]
        %v1799 = vld [vmem:[#allocation10 + $0x190] sm:$0xff]
        %v1800 = vld [vmem:[#allocation10 + $0x198] sm:$0xff]
        %v1801 = vld [vmem:[#allocation10 + $0x1a0] sm:$0xff]
        %v1802 = vld [vmem:[#allocation10 + $0x1a8] sm:$0xff]
        %v1803 = vld [vmem:[#allocation10 + $0x1b0] sm:$0xff]
        %v1804 = vld [vmem:[#allocation10 + $0x1b8] sm:$0xff]
        %v1805 = vld [vmem:[#allocation10 + $0x1c0] sm:$0xff]
        %v1806 = vld [vmem:[#allocation10 + $0x1c8] sm:$0xff]
        %v1807 = vld [vmem:[#allocation10 + $0x1d0] sm:$0xff]
        %v1808 = vld [vmem:[#allocation10 + $0x1d8] sm:$0xff]
        %v1809 = vld [vmem:[#allocation10 + $0x1e0] sm:$0xff]
        %v1810 = vld [vmem:[#allocation10 + $0x1e8] sm:$0xff]
        %v1811 = vld [vmem:[#allocation10 + $0x1f0] sm:$0xff]
        %v1812 = vld [vmem:[#allocation10 + $0x1f8] sm:$0xff]
        %1813 = vmatpush.msra.mxu0 %v1809
        %1814 = vmatpush.msra.mxu0 %v1805
        %1815 = vmatpush.msra.mxu0 %v1801
        %1816 = vmatpush.msra.mxu0 %v1797
        %1817 = vmatpush.msra.mxu0 %v1793
        %1818 = vmatpush.msra.mxu0 %v1789
        %1819 = vmatpush.msra.mxu0 %v1785
        %1820 = vmatpush.msra.mxu0 %v1781
        %1821 = vmatpush.msra.mxu0 %v1777
        %1822 = vmatpush.msra.mxu0 %v1773
        %1823 = vmatpush.msra.mxu0 %v1769
        %1824 = vmatpush.msra.mxu0 %v1765
        %1825 = vmatpush.msra.mxu0 %v1761
        %1826 = vmatpush.msra.mxu0 %v1757
        %1827 = vmatpush.msra.mxu0 %v1753
        %1828 = vmatpush.msra.mxu0 %v1749
        %1829 = vmatmul.f32.gmra.mxu0 %v1747
        %v1830 = vpop.f32.mrf.mxu0
        %v1831 = vadd.f32 0.0, %v1830
        %1832 = vmatmul.f32.gmra.mxu0 %v1748
        %v1833 = vpop.f32.mrf.mxu0
        %v1834 = vadd.f32 0.0, %v1833
        %1835 = vdwg.mxu0
        %1836 = vmatpush.msra.mxu0 %v1810
        %1837 = vmatpush.msra.mxu0 %v1806
        %1838 = vmatpush.msra.mxu0 %v1802
        %1839 = vmatpush.msra.mxu0 %v1798
        %1840 = vmatpush.msra.mxu0 %v1794
        %1841 = vmatpush.msra.mxu0 %v1790
        %1842 = vmatpush.msra.mxu0 %v1786
        %1843 = vmatpush.msra.mxu0 %v1782
        %1844 = vmatpush.msra.mxu0 %v1778
        %1845 = vmatpush.msra.mxu0 %v1774
        %1846 = vmatpush.msra.mxu0 %v1770
        %1847 = vmatpush.msra.mxu0 %v1766
        %1848 = vmatpush.msra.mxu0 %v1762
        %1849 = vmatpush.msra.mxu0 %v1758
        %1850 = vmatpush.msra.mxu0 %v1754
        %1851 = vmatpush.msra.mxu0 %v1750
        %1852 = vmatmul.f32.gmra.mxu0 %v1747
        %v1853 = vpop.f32.mrf.mxu0
        %v1854 = vadd.f32 0.0, %v1853
        %1855 = vmatmul.f32.gmra.mxu0 %v1748
        %v1856 = vpop.f32.mrf.mxu0
        %v1857 = vadd.f32 0.0, %v1856
        %1858 = vdwg.mxu0
        %1859 = vmatpush.msra.mxu0 %v1811
        %1860 = vmatpush.msra.mxu0 %v1807
        %1861 = vmatpush.msra.mxu0 %v1803
        %1862 = vmatpush.msra.mxu0 %v1799
        %1863 = vmatpush.msra.mxu0 %v1795
        %1864 = vmatpush.msra.mxu0 %v1791
        %1865 = vmatpush.msra.mxu0 %v1787
        %1866 = vmatpush.msra.mxu0 %v1783
        %1867 = vmatpush.msra.mxu0 %v1779
        %1868 = vmatpush.msra.mxu0 %v1775
        %1869 = vmatpush.msra.mxu0 %v1771
        %1870 = vmatpush.msra.mxu0 %v1767
        %1871 = vmatpush.msra.mxu0 %v1763
        %1872 = vmatpush.msra.mxu0 %v1759
        %1873 = vmatpush.msra.mxu0 %v1755
        %1874 = vmatpush.msra.mxu0 %v1751
        %1875 = vmatmul.f32.gmra.mxu0 %v1747
        %v1876 = vpop.f32.mrf.mxu0
        %v1877 = vadd.f32 0.0, %v1876
        %1878 = vmatmul.f32.gmra.mxu0 %v1748
        %v1879 = vpop.f32.mrf.mxu0
        %v1880 = vadd.f32 0.0, %v1879
        %1881 = vdwg.mxu0
        %1882 = vmatpush.msra.mxu0 %v1812
        %1883 = vmatpush.msra.mxu0 %v1808
        %1884 = vmatpush.msra.mxu0 %v1804
        %1885 = vmatpush.msra.mxu0 %v1800
        %1886 = vmatpush.msra.mxu0 %v1796
        %1887 = vmatpush.msra.mxu0 %v1792
        %1888 = vmatpush.msra.mxu0 %v1788
        %1889 = vmatpush.msra.mxu0 %v1784
        %1890 = vmatpush.msra.mxu0 %v1780
        %1891 = vmatpush.msra.mxu0 %v1776
        %1892 = vmatpush.msra.mxu0 %v1772
        %1893 = vmatpush.msra.mxu0 %v1768
        %1894 = vmatpush.msra.mxu0 %v1764
        %1895 = vmatpush.msra.mxu0 %v1760
        %1896 = vmatpush.msra.mxu0 %v1756
        %1897 = vmatpush.msra.mxu0 %v1752
        %1898 = vmatmul.f32.gmra.mxu0 %v1747
        %v1899 = vpop.f32.mrf.mxu0
        %v1900 = vadd.f32 0.0, %v1899
        %1901 = vmatmul.f32.gmra.mxu0 %v1748
        %v1902 = vpop.f32.mrf.mxu0
        %v1903 = vadd.f32 0.0, %v1902
        %1904 = vdwg.mxu0
        %v1905 = vmax.f32 %v1831, 0.0
        %v1906 = vmax.f32 %v1854, 0.0
        %v1907 = vmax.f32 %v1877, 0.0
        %v1908 = vmax.f32 %v1900, 0.0
        %v1909 = vmax.f32 %v1834, 0.0
        %v1910 = vmax.f32 %v1857, 0.0
        %v1911 = vmax.f32 %v1880, 0.0
        %v1912 = vmax.f32 %v1903, 0.0
        %v1913 = vld [vmem:[#allocation12] sm:$0xff]
        %v1914 = vld [vmem:[#allocation12 + $0x8] sm:$0xff]
        %v1915 = vld [vmem:[#allocation12 + $0x10] sm:$0xff]
        %v1916 = vld [vmem:[#allocation12 + $0x18] sm:$0xff]
        %v1917 = vld [vmem:[#allocation12 + $0x20] sm:$0xff]
        %v1918 = vld [vmem:[#allocation12 + $0x28] sm:$0xff]
        %v1919 = vld [vmem:[#allocation12 + $0x30] sm:$0xff]
        %v1920 = vld [vmem:[#allocation12 + $0x38] sm:$0xff]
        %v1921 = vld [vmem:[#allocation12 + $0x40] sm:$0xff]
        %v1922 = vld [vmem:[#allocation12 + $0x48] sm:$0xff]
        %v1923 = vld [vmem:[#allocation12 + $0x50] sm:$0xff]
        %v1924 = vld [vmem:[#allocation12 + $0x58] sm:$0xff]
        %v1925 = vld [vmem:[#allocation12 + $0x60] sm:$0xff]
        %v1926 = vld [vmem:[#allocation12 + $0x68] sm:$0xff]
        %v1927 = vld [vmem:[#allocation12 + $0x70] sm:$0xff]
        %v1928 = vld [vmem:[#allocation12 + $0x78] sm:$0xff]
        %v1929 = vld [vmem:[#allocation12 + $0x80] sm:$0xff]
        %v1930 = vld [vmem:[#allocation12 + $0x88] sm:$0xff]
        %v1931 = vld [vmem:[#allocation12 + $0x90] sm:$0xff]
        %v1932 = vld [vmem:[#allocation12 + $0x98] sm:$0xff]
        %v1933 = vld [vmem:[#allocation12 + $0xa0] sm:$0xff]
        %v1934 = vld [vmem:[#allocation12 + $0xa8] sm:$0xff]
        %v1935 = vld [vmem:[#allocation12 + $0xb0] sm:$0xff]
        %v1936 = vld [vmem:[#allocation12 + $0xb8] sm:$0xff]
        %v1937 = vld [vmem:[#allocation12 + $0xc0] sm:$0xff]
        %v1938 = vld [vmem:[#allocation12 + $0xc8] sm:$0xff]
        %v1939 = vld [vmem:[#allocation12 + $0xd0] sm:$0xff]
        %v1940 = vld [vmem:[#allocation12 + $0xd8] sm:$0xff]
        %v1941 = vld [vmem:[#allocation12 + $0xe0] sm:$0xff]
        %v1942 = vld [vmem:[#allocation12 + $0xe8] sm:$0xff]
        %v1943 = vld [vmem:[#allocation12 + $0xf0] sm:$0xff]
        %v1944 = vld [vmem:[#allocation12 + $0xf8] sm:$0xff]
        %v1945 = vld [vmem:[#allocation12 + $0x100] sm:$0xff]
        %v1946 = vld [vmem:[#allocation12 + $0x108] sm:$0xff]
        %v1947 = vld [vmem:[#allocation12 + $0x110] sm:$0xff]
        %v1948 = vld [vmem:[#allocation12 + $0x118] sm:$0xff]
        %v1949 = vld [vmem:[#allocation12 + $0x120] sm:$0xff]
        %v1950 = vld [vmem:[#allocation12 + $0x128] sm:$0xff]
        %v1951 = vld [vmem:[#allocation12 + $0x130] sm:$0xff]
        %v1952 = vld [vmem:[#allocation12 + $0x138] sm:$0xff]
        %v1953 = vld [vmem:[#allocation12 + $0x140] sm:$0xff]
        %v1954 = vld [vmem:[#allocation12 + $0x148] sm:$0xff]
        %v1955 = vld [vmem:[#allocation12 + $0x150] sm:$0xff]
        %v1956 = vld [vmem:[#allocation12 + $0x158] sm:$0xff]
        %v1957 = vld [vmem:[#allocation12 + $0x160] sm:$0xff]
        %v1958 = vld [vmem:[#allocation12 + $0x168] sm:$0xff]
        %v1959 = vld [vmem:[#allocation12 + $0x170] sm:$0xff]
        %v1960 = vld [vmem:[#allocation12 + $0x178] sm:$0xff]
        %v1961 = vld [vmem:[#allocation12 + $0x180] sm:$0xff]
        %v1962 = vld [vmem:[#allocation12 + $0x188] sm:$0xff]
        %v1963 = vld [vmem:[#allocation12 + $0x190] sm:$0xff]
        %v1964 = vld [vmem:[#allocation12 + $0x198] sm:$0xff]
        %v1965 = vld [vmem:[#allocation12 + $0x1a0] sm:$0xff]
        %v1966 = vld [vmem:[#allocation12 + $0x1a8] sm:$0xff]
        %v1967 = vld [vmem:[#allocation12 + $0x1b0] sm:$0xff]
        %v1968 = vld [vmem:[#allocation12 + $0x1b8] sm:$0xff]
        %v1969 = vld [vmem:[#allocation12 + $0x1c0] sm:$0xff]
        %v1970 = vld [vmem:[#allocation12 + $0x1c8] sm:$0xff]
        %v1971 = vld [vmem:[#allocation12 + $0x1d0] sm:$0xff]
        %v1972 = vld [vmem:[#allocation12 + $0x1d8] sm:$0xff]
        %v1973 = vld [vmem:[#allocation12 + $0x1e0] sm:$0xff]
        %v1974 = vld [vmem:[#allocation12 + $0x1e8] sm:$0xff]
        %v1975 = vld [vmem:[#allocation12 + $0x1f0] sm:$0xff]
        %v1976 = vld [vmem:[#allocation12 + $0x1f8] sm:$0xff]
        %1977 = vmatpush.msra.mxu0 %v1928
        %1978 = vmatpush.msra.mxu0 %v1927
        %1979 = vmatpush.msra.mxu0 %v1926
        %1980 = vmatpush.msra.mxu0 %v1925
        %1981 = vmatpush.msra.mxu0 %v1924
        %1982 = vmatpush.msra.mxu0 %v1923
        %1983 = vmatpush.msra.mxu0 %v1922
        %1984 = vmatpush.msra.mxu0 %v1921
        %1985 = vmatpush.msra.mxu0 %v1920
        %1986 = vmatpush.msra.mxu0 %v1919
        %1987 = vmatpush.msra.mxu0 %v1918
        %1988 = vmatpush.msra.mxu0 %v1917
        %1989 = vmatpush.msra.mxu0 %v1916
        %1990 = vmatpush.msra.mxu0 %v1915
        %1991 = vmatpush.msra.mxu0 %v1914
        %1992 = vmatpush.msra.mxu0 %v1913
        %1993 = vmatmul.f32.gmra.mxu0 %v1905
        %v1994 = vpop.f32.mrf.mxu0
        %v1995 = vadd.f32 %v1747, %v1994
        %1996 = vmatmul.f32.gmra.mxu0 %v1909
        %v1997 = vpop.f32.mrf.mxu0
        %v1998 = vadd.f32 %v1748, %v1997
        %1999 = vdwg.mxu0
        %2000 = vmatpush.msra.mxu0 %v1944
        %2001 = vmatpush.msra.mxu0 %v1943
        %2002 = vmatpush.msra.mxu0 %v1942
        %2003 = vmatpush.msra.mxu0 %v1941
        %2004 = vmatpush.msra.mxu0 %v1940
        %2005 = vmatpush.msra.mxu0 %v1939
        %2006 = vmatpush.msra.mxu0 %v1938
        %2007 = vmatpush.msra.mxu0 %v1937
        %2008 = vmatpush.msra.mxu0 %v1936
        %2009 = vmatpush.msra.mxu0 %v1935
        %2010 = vmatpush.msra.mxu0 %v1934
        %2011 = vmatpush.msra.mxu0 %v1933
        %2012 = vmatpush.msra.mxu0 %v1932
        %2013 = vmatpush.msra.mxu0 %v1931
        %2014 = vmatpush.msra.mxu0 %v1930
        %2015 = vmatpush.msra.mxu0 %v1929
        %2016 = vmatmul.f32.gmra.mxu0 %v1906
        %v2017 = vpop.f32.mrf.mxu0
        %v2018 = vadd.f32 %v1995, %v2017
        %2019 = vmatmul.f32.gmra.mxu0 %v1910
        %v2020 = vpop.f32.mrf.mxu0
        %v2021 = vadd.f32 %v1998, %v2020
        %2022 = vdwg.mxu0
        %2023 = vmatpush.msra.mxu0 %v1960
        %2024 = vmatpush.msra.mxu0 %v1959
        %2025 = vmatpush.msra.mxu0 %v1958
        %2026 = vmatpush.msra.mxu0 %v1957
        %2027 = vmatpush.msra.mxu0 %v1956
        %2028 = vmatpush.msra.mxu0 %v1955
        %2029 = vmatpush.msra.mxu0 %v1954
        %2030 = vmatpush.msra.mxu0 %v1953
        %2031 = vmatpush.msra.mxu0 %v1952
        %2032 = vmatpush.msra.mxu0 %v1951
        %2033 = vmatpush.msra.mxu0 %v1950
        %2034 = vmatpush.msra.mxu0 %v1949
        %2035 = vmatpush.msra.mxu0 %v1948
        %2036 = vmatpush.msra.mxu0 %v1947
        %2037 = vmatpush.msra.mxu0 %v1946
        %2038 = vmatpush.msra.mxu0 %v1945
        %2039 = vmatmul.f32.gmra.mxu0 %v1907
        %v2040 = vpop.f32.mrf.mxu0
        %v2041 = vadd.f32 %v2018, %v2040
        %2042 = vmatmul.f32.gmra.mxu0 %v1911
        %v2043 = vpop.f32.mrf.mxu0
        %v2044 = vadd.f32 %v2021, %v2043
        %2045 = vdwg.mxu0
        %2046 = vmatpush.msra.mxu0 %v1976
        %2047 = vmatpush.msra.mxu0 %v1975
        %2048 = vmatpush.msra.mxu0 %v1974
        %2049 = vmatpush.msra.mxu0 %v1973
        %2050 = vmatpush.msra.mxu0 %v1972
        %2051 = vmatpush.msra.mxu0 %v1971
        %2052 = vmatpush.msra.mxu0 %v1970
        %2053 = vmatpush.msra.mxu0 %v1969
        %2054 = vmatpush.msra.mxu0 %v1968
        %2055 = vmatpush.msra.mxu0 %v1967
        %2056 = vmatpush.msra.mxu0 %v1966
        %2057 = vmatpush.msra.mxu0 %v1965
        %2058 = vmatpush.msra.mxu0 %v1964
        %2059 = vmatpush.msra.mxu0 %v1963
        %2060 = vmatpush.msra.mxu0 %v1962
        %2061 = vmatpush.msra.mxu0 %v1961
        %2062 = vmatmul.f32.gmra.mxu0 %v1908
        %v2063 = vpop.f32.mrf.mxu0
        %v2064 = vadd.f32 %v2041, %v2063
        %2065 = vmatmul.f32.gmra.mxu0 %v1912
        %v2066 = vpop.f32.mrf.mxu0
        %v2067 = vadd.f32 %v2044, %v2066
        %2068 = vdwg.mxu0
        %v2069 = vld [vmem:[%s11] sm:$0x1]
        %v2070 = vld [vmem:[%s12] sm:$0x1]
        %2071 = vadd.xlane.f32.xlu0 %v2064
        %v2072 = vpop.xlane.xlu0 %2071
        %2073 = vadd.xlane.f32.xlu0 %v2067
        %v2074 = vpop.xlane.xlu0 %2073
        %v2075 = vmul.f32 %v2072, %v1702
        %v2076 = vmul.f32 %v2074, %v1702
        %v2077 = vsub.f32 %v2064, %v2075
        %v2078 = vsub.f32 %v2067, %v2076
        %v2079 = vmul.f32 %v2077, %v2077
        %v2080 = vmul.f32 %v2078, %v2078
        %2081 = vadd.xlane.f32.xlu0 %v2079
        %v2082 = vpop.xlane.xlu0 %2081
        %2083 = vadd.xlane.f32.xlu0 %v2080
        %v2084 = vpop.xlane.xlu0 %2083
        %v2085 = vmul.f32 %v2082, %v1702
        %v2086 = vmul.f32 %v2084, %v1702
        %v2087 = vadd.f32 %v2085, 1e-05
        %v2088 = vadd.f32 %v2086, 1e-05
        %v2089 = vrsqrt.pop %v2087
        %v2090 = vmul.f32 %v2089, %v2087
        %v2091 = vmul.f32 %v2090, %v2089
        %v2092 = vmul.f32 0.5, %v2091
        %v2093 = vsub.f32 1.5, %v2092
        %v2094 = vmul.f32 %v2089, %v2093
        %vm2095 = vweird.f32 %v2087
        %vm2096 = vweird.f32 %v2089
        %vm2097 = vmor %vm2095, %vm2096
        %v2098 = vsel %vm2097, %v2089, %v2094
        %v2099 = vrsqrt.pop %v2088
        %v2100 = vmul.f32 %v2099, %v2088
        %v2101 = vmul.f32 %v2100, %v2099
        %v2102 = vmul.f32 0.5, %v2101
        %v2103 = vsub.f32 1.5, %v2102
        %v2104 = vmul.f32 %v2099, %v2103
        %vm2105 = vweird.f32 %v2088
        %vm2106 = vweird.f32 %v2099
        %vm2107 = vmor %vm2105, %vm2106
        %v2108 = vsel %vm2107, %v2099, %v2104
        %v2109 = vmul.f32 %v2077, %v2098
        %v2110 = vmul.f32 %v2078, %v2108
        %v2112 = vperm.slane %v2069, 0
        %v2114 = vmul.f32 %v2109, %v2112
        %v2115 = vmul.f32 %v2110, %v2112
        %v2117 = vperm.slane %v2070, 0
        %v2119 = vadd.f32 %v2114, %v2117
        %v2120 = vadd.f32 %v2115, %v2117
        %v2121 = vlaneseq
        %v2122 = vshrl.u32 %v2121, 7
        %v2123 = vadd.s32 %v2122, 8
        %vm2124 = vcmp.lt.s32.totalorder %v2122, %v601
        %vm2125 = vcmp.lt.s32.totalorder %v2123, %v601
        %v2126 = vsel %vm2124, 1, 0
        %v2127 = vsel %vm2125, 1, 0
        %v2128 = vcvt.s32.f32 %v2126
        %v2129 = vcvt.s32.f32 %v2127
        %v2130 = vmul.f32 %v2119, %v2128
        %v2131 = vmul.f32 %v2120, %v2129
        %v2132 = vadd.f32 %v2130, %v2131
        %v2133 = vrot.slane %v2132, 4
        %v2134 = vadd.f32 %v2132, %v2133
        %v2135 = vrot.slane %v2134, 2
        %v2136 = vadd.f32 %v2134, %v2135
        %v2137 = vrot.slane %v2136, 1
        %v2138 = vadd.f32 %v2136, %v2137
        %p2139 = scmp.gt.s32.totalorder %s561, 1
        %s2140 = scalar_select %p2139, %s561, 1
        %s2141 = scvt.s32.f32 %s2140
        %v2142 = vstv %s2141
        %v2143 = vrcp.pop %v2142
        %v2144 = vmul.f32 %v2142, %v2143
        %v2145 = vsub.f32 1.0, %v2144
        %v2146 = vmul.f32 %v2143, %v2145
        %v2147 = vadd.f32 %v2143, %v2146
        %vm2148 = vweird.f32 %v2142
        %vm2149 = vweird.f32 %v2143
        %vm2150 = vmor %vm2148, %vm2149
        %v2151 = vsel %vm2150, %v2143, %v2147
        %v2152 = vand.u32 2147483647, %v2142
        %vm2153 = vcmp.eq.f32.partialorder %v2152, 8.507059e+37
        %v2154 = vand.u32 %v2142, 2147483648
        %v2155 = vor.u32 1.1754944e-38, %v2154
        %v2156 = vsel %vm2153, %v2155, %v2151
        %s2157 = vtos %v2156
        %v2158 = vstv %s2157
        %v2159 = vmul.f32 %v2138, %v2158
        %2160 = vst [vmem:[%s543] sm:$0x1] %v2159
        %s2161 = sand.u32 %s313, 1
        %s2162 = scalar_lea.sflag [#allocation6], %s2161
        %s2163 = sand.u32 %s313, 1
        %s2164 = scalar_lea.vmem [#allocation13], %s2163
        %s2165 = sand.u32 %s339, 1
        %s2166 = scalar_lea.sflag [#allocation15], %s2165
        %s2167 = sand.u32 %s339, 1
        %s2168 = smul.addr %s2167, 128
        %s2169 = scalar_lea.vmem [#allocation14], %s2168
        // Predicated region
        $region89: #{tpu_custom_call.1} parent=67 // pred_check
          %p2170 = pneg %p323
        $region90: #{tpu_custom_call.1} parent=67 // pred_check_branch
          %2172 = sbr.rel (%p2170) target = $region92
        $region91: #{tpu_custom_call.1} parent=67 // pred_region
          %2174 = vsyncadd %s2162, 0
          %s2175 = scalar_lea.hbm %s13, %s43
          %s2177 = sshll.u32 %s2164, 4
          %s2178 = int_to_ptr.vmem [resolvable:$true] %s2177
          %s2179 = sshll.u32 %s2175, 4
          %s2180 = int_to_ptr.hbm [resolvable:$true] %s2179
          %2182 = dma.vmem_to_hbm [thread:$0]  %s2178, 16, %s2180, %s2162
        $region92: #{tpu_custom_call.1} parent=67 // pred_fallthru
          _
        // Predicated region
        $region93: #{tpu_custom_call.1} parent=67 // pred_check
          %p2183 = pneg %p349
        $region94: #{tpu_custom_call.1} parent=67 // pred_check_branch
          %2185 = sbr.rel (%p2183) target = $region96
        $region95: #{tpu_custom_call.1} parent=67 // pred_region
          %2187 = vsyncadd %s2166, 0
          %s2188 = smul.addr %s43, 16
          %s2189 = smul.addr %s2188, 8
          %s2190 = scalar_lea.hbm %s14, %s2189
          %s2191 = sshll.u32 %s2169, 4
          %s2192 = int_to_ptr.vmem [resolvable:$true] %s2191
          %s2193 = sshll.u32 %s2190, 4
          %s2194 = int_to_ptr.hbm [resolvable:$true] %s2193
          %2199 = dma.vmem_to_hbm [thread:$0]  %s2192, 2048, %s2194, %s2166, 128, 128, 8
        $region96: #{tpu_custom_call.1} parent=67 // pred_fallthru
          _
      $region68: #{tpu_custom_call.1} parent=5 // pred_fallthru
        _
      %p2200 = scmp.le.s32.totalorder 2, %s38
      // Predicated region
      $region97: #{tpu_custom_call.1} parent=5 // pred_check
        %p2201 = pneg %p2200
      $region98: #{tpu_custom_call.1} parent=5 // pred_check_branch
        %2203 = sbr.rel (%p2201) target = $region100
      $region99: #{tpu_custom_call.1} parent=5 // pred_region
        %s2204 = ssub.s32 %s38, 2
        // Predicated region
        $region101: #{tpu_custom_call.1} parent=99 // pred_check
          %p2205 = pneg %p329
        $region102: #{tpu_custom_call.1} parent=99 // pred_check_branch
          %2207 = sbr.rel (%p2205) target = $region104
        $region103: #{tpu_custom_call.1} parent=99 // pred_region
          %s2208 = sand.u32 %s314, 1
          %s2209 = scalar_lea.sflag [#allocation6], %s2208
          %s2210 = sand.u32 %s314, 1
          %s2211 = scalar_lea.vmem [#allocation13], %s2210
          %2213 = dma.done %s2209, 16
        $region104: #{tpu_custom_call.1} parent=99 // pred_fallthru
          _
        // Predicated region
        $region105: #{tpu_custom_call.1} parent=99 // pred_check
          %p2214 = pneg %p355
        $region106: #{tpu_custom_call.1} parent=99 // pred_check_branch
          %2216 = sbr.rel (%p2214) target = $region108
        $region107: #{tpu_custom_call.1} parent=99 // pred_region
          %s2217 = sand.u32 %s340, 1
          %s2218 = scalar_lea.sflag [#allocation15], %s2217
          %s2219 = sand.u32 %s340, 1
          %s2220 = smul.addr %s2219, 128
          %s2221 = scalar_lea.vmem [#allocation14], %s2220
          %2223 = dma.done %s2218, 2048
        $region108: #{tpu_custom_call.1} parent=99 // pred_fallthru
          _
      $region100: #{tpu_custom_call.1} parent=5 // pred_fallthru
        _
    $region6: #{tpu_custom_call.1} parent=1 // loop_footer
      %s42 = sadd.s32 1, %s38
    $region7: #{tpu_custom_call.1} parent=1 // loop_footer_branch
      %37 = sbr.rel target = $region3
    $region8: #{tpu_custom_call.1} parent=1 // loop_exit
      _
    %2224 = vsyncpa [#allocation5], 1
    %s2225 = scalar_lea.sflag [#allocation5], 1
    %2226 = vsyncpa %s2225, 1
    %2227 = vsyncpa [#allocation8], 1
    %2228 = vsyncpa [#allocation11], 1
    %2229 = vsyncpa [#allocation6], 1
    %s2230 = scalar_lea.sflag [#allocation6], 1
    %2231 = vsyncpa %s2230, 1
    %2232 = vsyncpa [#allocation15], 1
    %s2233 = scalar_lea.sflag [#allocation15], 1
    %2234 = vsyncpa %s2233, 1

</llo_original>
